<compile_context>
chip_gen: v7x
topology: tpu7x:2x2x1
jax: 0.10.0
libtpu: 0.0.40
codegen_flags: <defaults>
</compile_context>

<pallas_src>
import functools

import jax
import jax.numpy as jnp
from jax import lax
from jax.experimental import pallas as pl
from jax.experimental.pallas import tpu as pltpu

LANE = 128
VMEM_BUDGET = 32 * 1024 * 1024  # explicit scoped-VMEM budget, safe on v5e/v6e/v7x


def _round_up(x, m):
    return (x + m - 1) // m * m


def _pick_mblk(m, mblk_max):
    """Row-block size: biggest block <= mblk_max that still yields >=2 grid
    steps (so v7x megacore can split the parallel axis), sublane-aligned."""
    n_steps = max(2, -(-m // mblk_max))
    blk = _round_up(-(-m // n_steps), 32)
    return max(32, min(blk, mblk_max))


# ----------------------------------------------------------------------------
# _calc_func (exact port)
# ----------------------------------------------------------------------------
def _calc_func(seq_len, axis):
    padding = 0
    dilation = 1
    kernel_size_params = [11, 21]
    stride_params = [1, 1]
    kernel_size = kernel_size_params[axis]
    stride = stride_params[axis]
    top = seq_len + 2 * padding - dilation * (kernel_size - 1) - 1
    return jnp.floor(top / stride + 1).astype(jnp.int32)


# ----------------------------------------------------------------------------
# Generic row/K-blocked GEMM + affine (+ReLU) kernel
#   (conv/BN/ReLU im2col GEMM, hoisted LSTM x@W_ih projection)
# ----------------------------------------------------------------------------
def _gemm_affine_kernel(x_ref, w_ref, scale_ref, shift_ref, o_ref, acc_ref, *, relu):
    # x: (mblk, kblk) bf16   w: (kblk, N) bf16   scale/shift: (1, N) f32
    # acc: (mblk, N) f32 scratch carried across the K reduction axis.
    @pl.when(pl.program_id(1) == 0)
    def _():
        acc_ref[...] = jnp.zeros_like(acc_ref)

    acc_ref[...] += jnp.dot(x_ref[...], w_ref[...],
                            preferred_element_type=jnp.float32)

    @pl.when(pl.program_id(1) == pl.num_programs(1) - 1)
    def _():
        acc = acc_ref[...] * scale_ref[...] + shift_ref[...]
        if relu:
            acc = jnp.maximum(acc, 0.0)
        o_ref[...] = acc.astype(o_ref.dtype)


def gemm_affine(x, w, scale, shift, *, relu, out_dtype=jnp.float32,
                mblk=512, kblk=512):
    """(M, K) @ (K, N) * scale + shift.

    Grid = (M row-blocks ["parallel"], K blocks ["arbitrary"]).  K and N must
    be multiples of 128 on entry (lane-dense operands / stores); K is further
    zero-padded to a kblk multiple when tiled.
    """
    M, K = x.shape
    N = w.shape[1]
    assert K % LANE == 0 and N % LANE == 0
    x = x.astype(jnp.bfloat16)
    w = w.astype(jnp.bfloat16)

    mblk = _pick_mblk(M, mblk)
    Mp = _round_up(M, mblk)
    if Mp != M:
        x = jnp.pad(x, ((0, Mp - M), (0, 0)))

    kblk = min(kblk, K)
    Kp = _round_up(K, kblk)
    if Kp != K:
        x = jnp.pad(x, ((0, 0), (0, Kp - K)))
        w = jnp.pad(w, ((0, Kp - K), (0, 0)))

    out = pl.pallas_call(
        functools.partial(_gemm_affine_kernel, relu=relu),
        out_shape=jax.ShapeDtypeStruct((Mp, N), out_dtype),
        grid_spec=pltpu.PrefetchScalarGridSpec(
            num_scalar_prefetch=0,
            grid=(Mp // mblk, Kp // kblk),
            in_specs=[
                pl.BlockSpec((mblk, kblk), lambda i, k: (i, k)),
                pl.BlockSpec((kblk, N), lambda i, k: (k, 0)),
                pl.BlockSpec((1, N), lambda i, k: (0, 0)),
                pl.BlockSpec((1, N), lambda i, k: (0, 0)),
            ],
            out_specs=pl.BlockSpec((mblk, N), lambda i, k: (i, 0)),
            scratch_shapes=[pltpu.VMEM((mblk, N), jnp.float32)],
        ),
        compiler_params=pltpu.CompilerParams(
            dimension_semantics=("parallel", "arbitrary"),
            vmem_limit_bytes=VMEM_BUDGET,
        ),
    )(x, w, scale, shift)
    return out[:M]


# ----------------------------------------------------------------------------
# LSTM recurrence kernel (input projection already hoisted into gates_x)
# ----------------------------------------------------------------------------
def _lstm_rec_kernel(gx_ref, whh_ref, o_ref, h_sc, c_sc):
    # gx: (Tc, bs, 4*Hp) bf16   whh: (Hp, 4*Hp) bf16   o: (Tc, bs, Hp) bf16
    # h_sc: (bs, Hp) bf16  /  c_sc: (bs, Hp) f32 scratch carried across time.
    @pl.when(pl.program_id(1) == 0)
    def _():
        h_sc[...] = jnp.zeros_like(h_sc)
        c_sc[...] = jnp.zeros_like(c_sc)

    Tc = gx_ref.shape[0]
    Hp = whh_ref.shape[0]

    def step(t, carry):
        h, c = carry  # h: bf16 (no per-step cast on the critical MXU path)
        gates = gx_ref[t].astype(jnp.float32) + jnp.dot(
            h, whh_ref[...], preferred_element_type=jnp.float32)
        # PyTorch gate order i, f, g, o; each gate is 128-lane aligned (Hp pad).
        i_g = jax.nn.sigmoid(gates[:, 0:Hp])
        f_g = jax.nn.sigmoid(gates[:, Hp:2 * Hp])
        g_g = jnp.tanh(gates[:, 2 * Hp:3 * Hp])
        o_g = jax.nn.sigmoid(gates[:, 3 * Hp:4 * Hp])  # issued before tanh(c_new)
        c_new = f_g * c + i_g * g_g
        h_new = (o_g * jnp.tanh(c_new)).astype(jnp.bfloat16)
        o_ref[t] = h_new
        return (h_new, c_new)

    h_fin, c_fin = lax.fori_loop(0, Tc, step, (h_sc[...], c_sc[...]), unroll=8)
    h_sc[...] = h_fin
    c_sc[...] = c_fin


def lstm_layer(x, w_ih_pad, w_hh_pad, b_pad, *, t_chunk=64):
    """x: (T, B, D) -> (T, B, Hp) bf16.  Valid hidden units in [:H]; pad cols 0."""
    T, B, D = x.shape
    Dp, G4 = w_ih_pad.shape
    Hp = G4 // 4
    if D != Dp:
        x = jnp.pad(x, ((0, 0), (0, 0), (0, Dp - D)))

    # Hoisted input projection: one lane-dense MXU GEMM instead of T tiny ones.
    # Stored in bf16 (largest activation streamed by the DMA-bound recurrence).
    ones = jnp.ones((1, G4), jnp.float32)
    gx = gemm_affine(x.reshape(T * B, Dp), w_ih_pad, ones, b_pad, relu=False,
                     out_dtype=jnp.bfloat16)
    gx = gx.reshape(T, B, G4)

    Tc = min(T, t_chunk)
    Tp = _round_up(T, Tc)
    if Tp != T:
        gx = jnp.pad(gx, ((0, Tp - T), (0, 0), (0, 0)))

    # Batch sharding across TensorCores (v7x megacore); only when the per-shard
    # batch keeps blocks (8,128)/(16,128)-aligned.  Otherwise a trivial axis.
    b_shards = 2 if (B % 32 == 0) else 1
    bs = B // b_shards

    out = pl.pallas_call(
        _lstm_rec_kernel,
        out_shape=jax.ShapeDtypeStruct((Tp, B, Hp), jnp.bfloat16),
        grid_spec=pltpu.PrefetchScalarGridSpec(
            num_scalar_prefetch=0,
            grid=(b_shards, Tp // Tc),
            in_specs=[
                pl.BlockSpec((Tc, bs, G4), lambda b, t: (t, b, 0)),
                pl.BlockSpec((Hp, G4), lambda b, t: (0, 0)),
            ],
            out_specs=pl.BlockSpec((Tc, bs, Hp), lambda b, t: (t, b, 0)),
            scratch_shapes=[
                pltpu.VMEM((bs, Hp), jnp.bfloat16),
                pltpu.VMEM((bs, Hp), jnp.float32),
            ],
        ),
        compiler_params=pltpu.CompilerParams(
            dimension_semantics=("parallel", "arbitrary"),  # batch x sequential time
            vmem_limit_bytes=VMEM_BUDGET,
        ),
    )(gx, w_hh_pad.astype(jnp.bfloat16))
    return out[:T]


# ----------------------------------------------------------------------------
# Fused FC + log-softmax kernel (row-blocked, lane-dense single output)
# ----------------------------------------------------------------------------
def _fc_logsoftmax_kernel(x_ref, w_ref, b_ref, logp_ref):
    # x: (mblk, Hp) bf16   w: (Hp, Op) bf16   b: (1, Op) f32 (-1e9 in pad cols)
    logits = jnp.dot(x_ref[...], w_ref[...], preferred_element_type=jnp.float32)
    logits = logits + b_ref[...]
    m = jnp.max(logits, axis=-1, keepdims=True)
    e = jnp.exp(logits - m)
    s = jnp.sum(e, axis=-1, keepdims=True)
    logp_ref[...] = (logits - m - jnp.log(s)).astype(logp_ref.dtype)


def fc_log_softmax(x, w_pad, b_pad, out_dim, *, mblk=512):
    T, B, Hp = x.shape
    Op = w_pad.shape[1]
    M = T * B
    x2 = x.reshape(M, Hp).astype(jnp.bfloat16)
    mblk = _pick_mblk(M, mblk)
    Mp = _round_up(M, mblk)
    if Mp != M:
        x2 = jnp.pad(x2, ((0, Mp - M), (0, 0)))
    logp = pl.pallas_call(
        _fc_logsoftmax_kernel,
        out_shape=jax.ShapeDtypeStruct((Mp, Op), jnp.float32),
        grid_spec=pltpu.PrefetchScalarGridSpec(
            num_scalar_prefetch=0,
            grid=(Mp // mblk,),
            in_specs=[
                pl.BlockSpec((mblk, Hp), lambda i: (i, 0)),
                pl.BlockSpec((Hp, Op), lambda i: (0, 0)),
                pl.BlockSpec((1, Op), lambda i: (0, 0)),
            ],
            out_specs=pl.BlockSpec((mblk, Op), lambda i: (i, 0)),
        ),
        compiler_params=pltpu.CompilerParams(
            dimension_semantics=("parallel",),
            vmem_limit_bytes=VMEM_BUDGET,
        ),
    )(x2, w_pad.astype(jnp.bfloat16), b_pad)
    logp = logp[:M, :out_dim].reshape(T, B, out_dim)
    prob = jnp.exp(logp)  # softmax == exp(log_softmax): saves a full f32 store
    return logp, prob


# ----------------------------------------------------------------------------
# Glue: im2col conv wrapper (channels-last), STFT, parameters
# ----------------------------------------------------------------------------
def conv2d_bn_relu_nhwc(x, w, b, gamma, beta, rmean, rvar, eps=1e-5):
    """x: (B, F, T, Cin) channels-last; w: torch (Cout, Cin, KF, KT).
    Returns (B, Fo, To, Cout) in bf16 (lane-padded GEMM internally)."""
    B, F, T, Cin = x.shape
    Cout, _, KF, KT = w.shape
    Fo, To = F - KF + 1, T - KT + 1
    cols = [x[:, i:i + Fo, j:j + To, :] for i in range(KF) for j in range(KT)]
    patches = jnp.stack(cols, axis=3)                 # (B, Fo, To, KF*KT, Cin)
    K = KF * KT * Cin
    patches = patches.reshape(B * Fo * To, K)
    Kp = _round_up(K, LANE)
    Np = _round_up(Cout, LANE)
    patches = jnp.pad(patches, ((0, 0), (0, Kp - K)))
    wmat = w.transpose(2, 3, 1, 0).reshape(K, Cout)   # rows ordered (kf, kt, cin)
    wmat = jnp.pad(wmat, ((0, Kp - K), (0, Np - Cout)))
    scale = gamma / jnp.sqrt(rvar + eps)
    shift = beta + scale * (b - rmean)
    scale_p = jnp.pad(scale, (0, Np - Cout))[None, :]
    shift_p = jnp.pad(shift, (0, Np - Cout))[None, :]
    out = gemm_affine(patches, wmat, scale_p, shift_p, relu=True,
                      out_dtype=jnp.bfloat16)
    return out[:, :Cout].reshape(B, Fo, To, Cout)


def wave_to_spec(x, seq_len, n_fft, hop):
    """Simple magnitude-STFT stand-in for the undefined StftHandler."""
    B, N = x.shape
    n = jnp.arange(n_fft, dtype=jnp.float32)
    window = 0.5 - 0.5 * jnp.cos(2.0 * jnp.pi * n / (n_fft - 1))
    n_frames = (N - n_fft) // hop + 1
    idx = jnp.arange(n_frames)[:, None] * hop + jnp.arange(n_fft)[None, :]
    frames = x[:, idx] * window                       # (B, n_frames, n_fft)
    spec = jnp.fft.rfft(frames, axis=-1)              # (B, n_frames, F)
    spec = jnp.transpose(spec, (0, 2, 1))             # (B, F, n_frames)
    new_len = (seq_len - n_fft) // hop + 1
    return spec, new_len


def init_params(key, n_feats, n_channels, hidden_size, num_layers, out_dim):
    keys = list(jax.random.split(key, 64))
    nk = iter(keys)

    def rnd(shape, s=0.1):
        return s * jax.random.normal(next(nk), shape, jnp.float32)

    C, H = n_channels, hidden_size
    Hp = _round_up(H, LANE)
    params = {
        "conv1_w": rnd((C, 1, 11, 21)),
        "conv1_b": rnd((C,)),
        "bn1_gamma": 1.0 + rnd((C,)),
        "bn1_beta": rnd((C,)),
        "bn1_mean": rnd((C,)),
        "bn1_var": 0.5 + jax.random.uniform(next(nk), (C,), jnp.float32),
        "conv2_w": rnd((C, C, 11, 21)),
        "conv2_b": rnd((C,)),
        "bn2_gamma": 1.0 + rnd((C,)),
        "bn2_beta": rnd((C,)),
        "bn2_mean": rnd((C,)),
        "bn2_var": 0.5 + jax.random.uniform(next(nk), (C,), jnp.float32),
        "out_dim": out_dim,
    }
    # Actual flattened conv-output feature dim fed to the LSTM.
    in_dim = C * (n_feats - 20)
    lstm = []
    d_real = in_dim
    for _ in range(num_layers):
        d_pad = _round_up(d_real, LANE)
        w_ih = rnd((4 * H, d_real))          # torch layout (4H, D)
        w_hh = rnd((4 * H, H))               # torch layout (4H, H)
        b_sum = rnd((4 * H,)) + rnd((4 * H,))  # b_ih + b_hh
        # Repack lane-aligned: each gate occupies its own Hp=128-wide column
        # block, so in-kernel gate slices are 128-lane aligned; padded rows /
        # columns are zero (padded hidden units stay exactly 0).
        w_ih_pad = jnp.zeros((d_pad, 4 * Hp), jnp.float32)
        w_hh_pad = jnp.zeros((Hp, 4 * Hp), jnp.float32)
        b_pad = jnp.zeros((1, 4 * Hp), jnp.float32)
        for g in range(4):
            w_ih_pad = w_ih_pad.at[:d_real, g * Hp:g * Hp + H].set(
                w_ih[g * H:(g + 1) * H, :].T)
            w_hh_pad = w_hh_pad.at[:H, g * Hp:g * Hp + H].set(
                w_hh[g * H:(g + 1) * H, :].T)
            b_pad = b_pad.at[0, g * Hp:g * Hp + H].set(b_sum[g * H:(g + 1) * H])
        lstm.append({"w_ih": w_ih_pad, "w_hh": w_hh_pad, "b": b_pad})
        d_real = H
    params["lstm"] = lstm

    Op = _round_up(out_dim, LANE)
    fc_w = rnd((out_dim, H))                 # torch layout (out, H)
    params["fc_w"] = jnp.zeros((Hp, Op), jnp.float32).at[:H, :out_dim].set(fc_w.T)
    # -1e9 bias in padded logit columns keeps them out of the softmax.
    params["fc_b"] = jnp.full((1, Op), -1e9, jnp.float32).at[0, :out_dim].set(
        rnd((out_dim,)))
    return params


def deepspeech_forward(params, x, seq_len, n_feats):
    n_fft = 2 * (n_feats - 1)
    hop = n_fft // 2
    spec, seq_len = wave_to_spec(x, seq_len, n_fft, hop)
    mag = jnp.abs(spec)                      # spec_to_mag: (B, n_feats, T)
    h = mag[..., None]                       # (B, F, T, 1) channels-last

    h = conv2d_bn_relu_nhwc(
        h, params["conv1_w"], params["conv1_b"], params["bn1_gamma"],
        params["bn1_beta"], params["bn1_mean"], params["bn1_var"])
    h = conv2d_bn_relu_nhwc(
        h, params["conv2_w"], params["conv2_b"], params["bn2_gamma"],
        params["bn2_beta"], params["bn2_mean"], params["bn2_var"])

    B, F2, T2, C = h.shape
    # torch: view(B, C*F2, T2).transpose(1, 2) -> feature order (c, f2);
    # we go straight to time-major (T2, B, C*F2).
    feats = jnp.transpose(h, (2, 0, 3, 1)).reshape(T2, B, C * F2)

    y = feats
    for layer in params["lstm"]:
        y = lstm_layer(y, layer["w_ih"], layer["w_hh"], layer["b"])

    logp, prob = fc_log_softmax(y, params["fc_w"], params["fc_b"],
                                params["out_dim"])  # (T2, B, out_dim)

    new_seq_len = _calc_func(_calc_func(seq_len, 1), 1)
    return logp, prob, new_seq_len


if __name__ == "__main__":
    n_feats, n_channels, hidden_size, num_layers, out_dim = 32, 4, 32, 2, 16
    B, num_timesteps = 2, 1550

    key = jax.random.PRNGKey(0)
    k_x, k_p = jax.random.split(key)
    x = jax.random.normal(k_x, (B, num_timesteps), jnp.float32)
    seq_len = jnp.array([1550, 1450], jnp.int32)

    params = init_params(k_p, n_feats, n_channels, hidden_size, num_layers, out_dim)
    logp, prob, new_seq_len = deepspeech_forward(params, x, seq_len, n_feats)
    jax.block_until_ready((logp, prob, new_seq_len))

    # basic sanity: (T', B, vocab) outputs, probs sum to 1, exp(logp) == prob
    assert logp.shape == prob.shape and logp.shape[1] == B and logp.shape[2] == out_dim
    assert new_seq_len.shape == (B,)
    assert bool(jnp.all(jnp.isfinite(logp))) and bool(jnp.all(jnp.isfinite(prob)))
    assert jnp.allclose(jnp.sum(prob, axis=-1), 1.0, atol=1e-3)
    assert jnp.allclose(jnp.exp(logp), prob, atol=1e-3)
    print("KERNEL_OK")
</pallas_src>

<mosaic_0001>
module attributes {stable_mosaic.version = 11 : i64} {
  func.func @_gemm_affine_kernel(%arg0: i32, %arg1: i32, %arg2: memref<448x256xbf16, #tpu.memory_space<vmem>>, %arg3: memref<256x128xbf16, #tpu.memory_space<vmem>>, %arg4: memref<1x128xf32, #tpu.memory_space<vmem>>, %arg5: memref<1x128xf32, #tpu.memory_space<vmem>>, %arg6: memref<448x128xbf16, #tpu.memory_space<vmem>>, %arg7: memref<448x128xf32, #tpu.memory_space<vmem>>) attributes {dimension_semantics = [#tpu.dimension_semantics<parallel>, #tpu.dimension_semantics<arbitrary>], iteration_bounds = array<i64: 3, 1>, scalar_prefetch = 0 : i64, scratch_operands = 1 : i64, tpu.core_type = #tpu.core_type<tc>, window_params = [{transform_indices = @transform_0, window_bounds = array<i64: 448, 256>}, {transform_indices = @transform_1, window_bounds = array<i64: 256, 128>}, {pipeline_mode = #tpu.pipeline_mode<synchronous>, transform_indices = @transform_2, window_bounds = array<i64: 1, 128>}, {pipeline_mode = #tpu.pipeline_mode<synchronous>, transform_indices = @transform_3, window_bounds = array<i64: 1, 128>}, {transform_indices = @transform_4, window_bounds = array<i64: 448, 128>}]} {
    %c0_i32 = arith.constant 0 : i32
    %0 = arith.cmpi eq, %arg1, %c0_i32 : i32
    %1 = arith.extui %0 : i1 to i32
    %c0_i32_0 = arith.constant 0 : i32
    %2 = arith.cmpi ne, %1, %c0_i32_0 : i32
    scf.if %2 {
      %cst_10 = arith.constant 0.000000e+00 : f32
      %12 = vector.broadcast %cst_10 : f32 to vector<448x128xf32>
      %c0_11 = arith.constant 0 : index
      %c0_12 = arith.constant 0 : index
      %13 = vector.load %arg7[%c0_11, %c0_12] : memref<448x128xf32, #tpu.memory_space<vmem>>, vector<448x128xf32>
      tpu.vector_store %arg7[%c0_11, %c0_12], %12 {strides = array<i32>} : memref<448x128xf32, #tpu.memory_space<vmem>>, vector<448x128xf32>,
    } else {
    }
    %c0 = arith.constant 0 : index
    %c0_1 = arith.constant 0 : index
    %3 = vector.load %arg7[%c0, %c0_1] : memref<448x128xf32, #tpu.memory_space<vmem>>, vector<448x128xf32>
    %c0_2 = arith.constant 0 : index
    %c0_3 = arith.constant 0 : index
    %4 = vector.load %arg2[%c0_2, %c0_3] : memref<448x256xbf16, #tpu.memory_space<vmem>>, vector<448x256xbf16>
    %c0_4 = arith.constant 0 : index
    %c0_5 = arith.constant 0 : index
    %5 = vector.load %arg3[%c0_4, %c0_5] : memref<256x128xbf16, #tpu.memory_space<vmem>>, vector<256x128xbf16>
    %cst = arith.constant dense<0.000000e+00> : vector<448x128xf32>
    %6 = tpu.matmul %4, %5, %cst {dimension_numbers = #tpu.dot_dimension_numbers<[1], [0], [0], [1], [0, 0, 1, 1], [], []>} : vector<448x256xbf16>, vector<256x128xbf16>, vector<448x128xf32> -> vector<448x128xf32>
    %7 = arith.addf %3, %6 : vector<448x128xf32>
    %c0_6 = arith.constant 0 : index
    %c0_7 = arith.constant 0 : index
    %8 = vector.load %arg7[%c0_6, %c0_7] : memref<448x128xf32, #tpu.memory_space<vmem>>, vector<448x128xf32>
    tpu.vector_store %arg7[%c0_6, %c0_7], %7 {strides = array<i32>} : memref<448x128xf32, #tpu.memory_space<vmem>>, vector<448x128xf32>,
    %c0_i32_8 = arith.constant 0 : i32
    %9 = arith.cmpi eq, %arg1, %c0_i32_8 : i32
    %10 = arith.extui %9 : i1 to i32
    %c0_i32_9 = arith.constant 0 : i32
    %11 = arith.cmpi ne, %10, %c0_i32_9 : i32
    scf.if %11 {
      %c0_10 = arith.constant 0 : index
      %c0_11 = arith.constant 0 : index
      %12 = vector.load %arg7[%c0_10, %c0_11] : memref<448x128xf32, #tpu.memory_space<vmem>>, vector<448x128xf32>
      %c0_12 = arith.constant 0 : index
      %c0_13 = arith.constant 0 : index
      %13 = vector.load %arg4[%c0_12, %c0_13] : memref<1x128xf32, #tpu.memory_space<vmem>>, vector<1x128xf32>
      %14 = vector.broadcast %13 : vector<1x128xf32> to vector<448x128xf32>
      %15 = arith.mulf %12, %14 : vector<448x128xf32>
      %c0_14 = arith.constant 0 : index
      %c0_15 = arith.constant 0 : index
      %16 = vector.load %arg5[%c0_14, %c0_15] : memref<1x128xf32, #tpu.memory_space<vmem>>, vector<1x128xf32>
      %17 = vector.broadcast %16 : vector<1x128xf32> to vector<448x128xf32>
      %18 = arith.addf %15, %17 : vector<448x128xf32>
      %cst_16 = arith.constant 0.000000e+00 : f32
      %19 = vector.broadcast %cst_16 : f32 to vector<448x128xf32>
      %20 = arith.maximumf %18, %19 : vector<448x128xf32>
      %21 = arith.truncf %20 : vector<448x128xf32> to vector<448x128xbf16>
      %c0_17 = arith.constant 0 : index
      %c0_18 = arith.constant 0 : index
      %22 = vector.load %arg6[%c0_17, %c0_18] : memref<448x128xbf16, #tpu.memory_space<vmem>>, vector<448x128xbf16>
      tpu.vector_store %arg6[%c0_17, %c0_18], %21 {strides = array<i32>} : memref<448x128xbf16, #tpu.memory_space<vmem>>, vector<448x128xbf16>,
    } else {
    }
    return
  }
  func.func @transform_0(%arg0: i32, %arg1: i32) -> (i32, i32) {
    %c0_i32 = arith.constant 0 : i32
    return %arg0, %arg1 : i32, i32
  }
  func.func @transform_1(%arg0: i32, %arg1: i32) -> (i32, i32) {
    %c0_i32 = arith.constant 0 : i32
    %c0_i32_0 = arith.constant 0 : i32
    return %arg1, %c0_i32 : i32, i32
  }
  func.func @transform_2(%arg0: i32, %arg1: i32) -> (i32, i32) {
    %c0_i32 = arith.constant 0 : i32
    %c0_i32_0 = arith.constant 0 : i32
    %c0_i32_1 = arith.constant 0 : i32
    return %c0_i32, %c0_i32_0 : i32, i32
  }
  func.func @transform_3(%arg0: i32, %arg1: i32) -> (i32, i32) {
    %c0_i32 = arith.constant 0 : i32
    %c0_i32_0 = arith.constant 0 : i32
    %c0_i32_1 = arith.constant 0 : i32
    return %c0_i32, %c0_i32_0 : i32, i32
  }
  func.func @transform_4(%arg0: i32, %arg1: i32) -> (i32, i32) {
    %c0_i32 = arith.constant 0 : i32
    %c0_i32_0 = arith.constant 0 : i32
    return %arg0, %c0_i32 : i32, i32
  }
}

</mosaic_0001>

<llo_original>
// kernel: tpu_custom_call.1
$region0: #{tpu_custom_call.1}
  #allocation0 [shape = 'u32[]', space=smem, size = 0x4, offset = 0x4, fixed_abs, tag = 'smem constant byte address 0x4 - core index']
  #allocation1 [shape = 'u32[144,128]{1,0:T(1,128)}', space=vmem, size = 0x12000, scoped, tag = 'internal scratch']
  #allocation2 [shape = 'f32[448,128]{1,0:T(8,128)}', space=vmem, size = 0x38000, scoped, tag = 'scratch operand']
  %s0 = inlined_call_operand.hbm [shape: bf16[1344,256], index: 0, kind: input, shape index: {}]
  %s1 = inlined_call_operand.hbm [shape: bf16[256,128], index: 1, kind: input, shape index: {}]
  %s2 = inlined_call_operand.vmem [shape: f32[1,128], index: 2, kind: input, shape index: {}]
  %s3 = inlined_call_operand.vmem [shape: f32[1,128], index: 3, kind: input, shape index: {}]
  %s4 = inlined_call_operand.hbm [shape: bf16[1344,128], index: 4, kind: output, shape index: {}]
  %s5 = sld [smem:[#allocation0]]
  $region65: #{tpu_custom_call.1} parent=0
    _
  %s7 = ssub.s32 1, %s5
  %s8 = scalar_select 0, %s7, %s5
  $region1: #{tpu_custom_call.1} parent=0
    #allocation3 [shape = 'u8[458752]{0}', space=vmem, size = 0x70000, scoped, tag = 'input window, operand 0']
    #allocation4 [shape = 's32[2]{0}', space=sflag, size = 0x8, scoped, tag = 'scoped memory for tpu_custom_call.1']
    #allocation5 [shape = 's32[2]{0}', space=sflag, size = 0x8, scoped, tag = 'scoped memory for tpu_custom_call.1']
    #allocation6 [shape = 'u8[65536]{0}', space=vmem, size = 0x10000, scoped, tag = 'input window, operand 1, single buffered']
    #allocation7 [shape = 's32[1]{0}', space=sflag, size = 0x4, scoped, tag = 'scoped memory for tpu_custom_call.1']
    #allocation8 [shape = 'u8[229376]{0}', space=vmem, size = 0x38000, scoped, tag = 'output window, operand 0']
    %9 = vsyncpa [#allocation4], 0
    %s10 = scalar_lea.sflag [#allocation4], 1
    %11 = vsyncpa %s10, 0
    %12 = vsyncpa [#allocation7], 0
    %13 = vsyncpa [#allocation5], 0
    %s14 = scalar_lea.sflag [#allocation5], 1
    %15 = vsyncpa %s14, 0
    loop: start=0, step=1, limit=5
    $region2: #{tpu_custom_call.1} parent=1 // loop_pre_header
      _
    $region3: #{tpu_custom_call.1} parent=1 // loop_header
      %s17 = sphi 0, %s21
      %p18 = scmp.ge.s32.totalorder %s17, 5
      %s24 = sphi 0, %s36
      %s25 = sphi 0, %s32
      %s26 = sphi 0, %s24
      %s27 = sphi 0, %s25
      %s28 = sphi 0, %s26
      %s29 = sphi 0, %s27
      %s41 = sphi 0, %s43
      %s44 = sphi 0, %s41
      %s45 = sphi 0, %s44
      %s61 = sphi 0, %s45
      %s67 = sphi 0, %s69
      %s70 = sphi 0, %s67
      %s71 = sphi 0, %s70
      %s87 = sphi 0, %s71
      %s91 = sphi 0, %s91
      %s93 = sphi 0, %s91
      %s94 = sphi 0, %s93
      %s108 = sphi 0, %s94
      %s112 = sphi 0, %s112
      %s114 = sphi 0, %s112
      %s115 = sphi 0, %s114
      %s129 = sphi 0, %s115
      %s135 = sphi 0, %s137
      %s138 = sphi 0, %s135
      %s139 = sphi 0, %s138
      %s155 = sphi 0, %s139
    $region4: #{tpu_custom_call.1} parent=1 // loop_header_branch
      %20 = sbr.rel (%p18) target = $region8
    $region5: #{tpu_custom_call.1} parent=1 // loop_body
      %s22 = ssub.s32 %s17, 1
      %s23 = ssub.s32 %s17, 2
      %s30 = sadd.s32 1, %s25
      %p31 = scmp.ge.s32.totalorder %s30, 1
      %s32 = scalar_select %p31, 0, %s30
      %s33 = sadd.s32 1, %s24
      %s34 = scalar_select %p31, %s33, %s24
      %p35 = scmp.ge.s32.totalorder %s34, 3
      %s36 = scalar_select %p35, 0, %s34
      %s37 = ssub.s32 %s24, %s36
      %s38 = ssub.s32 %s25, %s32
      %s39 = sor.u32 %s37, %s38
      %p40 = scmp.eq.s32.totalorder %s39, 0
      %s42 = sadd.s32 %s41, 1
      %s43 = scalar_select %p40, %s41, %s42
      %p46 = pneg %p40
      %p47 = scmp.eq.s32.totalorder %s17, 2
      %p48 = por %p46, %p47
      %p49 = scmp.ne.s32.totalorder %s41, %s44
      %p50 = scmp.eq.s32.totalorder %s17, 0
      %p51 = por %p49, %p50
      %p52 = scmp.ne.s32.totalorder %s41, %s44
      %p53 = scmp.eq.s32.totalorder %s22, 2
      %p54 = por %p52, %p53
      %p55 = scmp.ne.s32.totalorder %s44, %s45
      %p56 = scmp.eq.s32.totalorder %s22, 0
      %p57 = por %p55, %p56
      %p58 = scmp.ne.s32.totalorder %s44, %s45
      %p59 = scmp.eq.s32.totalorder %s23, 2
      %p60 = por %p58, %p59
      %p62 = scmp.ne.s32.totalorder %s45, %s61
      %p63 = scmp.eq.s32.totalorder %s23, 0
      %p64 = por %p62, %p63
      %s65 = ssub.s32 %s25, %s32
      %p66 = scmp.eq.s32.totalorder %s65, 0
      %s68 = sadd.s32 %s67, 1
      %s69 = scalar_select %p66, %s67, %s68
      %p72 = pneg %p66
      %p73 = scmp.eq.s32.totalorder %s17, 2
      %p74 = por %p72, %p73
      %p75 = scmp.ne.s32.totalorder %s67, %s70
      %p76 = scmp.eq.s32.totalorder %s17, 0
      %p77 = por %p75, %p76
      %p78 = scmp.ne.s32.totalorder %s67, %s70
      %p79 = scmp.eq.s32.totalorder %s22, 2
      %p80 = por %p78, %p79
      %p81 = scmp.ne.s32.totalorder %s70, %s71
      %p82 = scmp.eq.s32.totalorder %s22, 0
      %p83 = por %p81, %p82
      %p84 = scmp.ne.s32.totalorder %s70, %s71
      %p85 = scmp.eq.s32.totalorder %s23, 2
      %p86 = por %p84, %p85
      %p88 = scmp.ne.s32.totalorder %s71, %s87
      %p89 = scmp.eq.s32.totalorder %s23, 0
      %p90 = por %p88, %p89
      %s92 = sadd.s32 %s91, 1
      %p95 = scmp.eq.s32.totalorder %s17, 2
      %p96 = scmp.ne.s32.totalorder %s91, %s93
      %p97 = scmp.eq.s32.totalorder %s17, 0
      %p98 = por %p96, %p97
      %p99 = scmp.ne.s32.totalorder %s91, %s93
      %p100 = scmp.eq.s32.totalorder %s22, 2
      %p101 = por %p99, %p100
      %p102 = scmp.ne.s32.totalorder %s93, %s94
      %p103 = scmp.eq.s32.totalorder %s22, 0
      %p104 = por %p102, %p103
      %p105 = scmp.ne.s32.totalorder %s93, %s94
      %p106 = scmp.eq.s32.totalorder %s23, 2
      %p107 = por %p105, %p106
      %p109 = scmp.ne.s32.totalorder %s94, %s108
      %p110 = scmp.eq.s32.totalorder %s23, 0
      %p111 = por %p109, %p110
      %s113 = sadd.s32 %s112, 1
      %p116 = scmp.eq.s32.totalorder %s17, 2
      %p117 = scmp.ne.s32.totalorder %s112, %s114
      %p118 = scmp.eq.s32.totalorder %s17, 0
      %p119 = por %p117, %p118
      %p120 = scmp.ne.s32.totalorder %s112, %s114
      %p121 = scmp.eq.s32.totalorder %s22, 2
      %p122 = por %p120, %p121
      %p123 = scmp.ne.s32.totalorder %s114, %s115
      %p124 = scmp.eq.s32.totalorder %s22, 0
      %p125 = por %p123, %p124
      %p126 = scmp.ne.s32.totalorder %s114, %s115
      %p127 = scmp.eq.s32.totalorder %s23, 2
      %p128 = por %p126, %p127
      %p130 = scmp.ne.s32.totalorder %s115, %s129
      %p131 = scmp.eq.s32.totalorder %s23, 0
      %p132 = por %p130, %p131
      %s133 = ssub.s32 %s24, %s36
      %p134 = scmp.eq.s32.totalorder %s133, 0
      %s136 = sadd.s32 %s135, 1
      %s137 = scalar_select %p134, %s135, %s136
      %p140 = pneg %p134
      %p141 = scmp.eq.s32.totalorder %s17, 2
      %p142 = por %p140, %p141
      %p143 = scmp.ne.s32.totalorder %s135, %s138
      %p144 = scmp.eq.s32.totalorder %s17, 0
      %p145 = por %p143, %p144
      %p146 = scmp.ne.s32.totalorder %s135, %s138
      %p147 = scmp.eq.s32.totalorder %s22, 2
      %p148 = por %p146, %p147
      %p149 = scmp.ne.s32.totalorder %s138, %s139
      %p150 = scmp.eq.s32.totalorder %s22, 0
      %p151 = por %p149, %p150
      %p152 = scmp.ne.s32.totalorder %s138, %s139
      %p153 = scmp.eq.s32.totalorder %s23, 2
      %p154 = por %p152, %p153
      %p156 = scmp.ne.s32.totalorder %s139, %s155
      %p157 = scmp.eq.s32.totalorder %s23, 0
      %p158 = por %p156, %p157
      %p159 = scmp.le.s32.totalorder 1, %s17
      %p160 = scmp.lt.s32.totalorder %s17, 4
      %p161 = pnand %p159, %p160
      %p162 = pneg %p161
      // Predicated region
      $region9: #{tpu_custom_call.1} parent=5 // pred_check
        _
      $region10: #{tpu_custom_call.1} parent=5 // pred_check_branch
        %164 = sbr.rel (%p161) target = $region12
      $region11: #{tpu_custom_call.1} parent=5 // pred_region
        %s165 = ssub.s32 %s17, 1
        // Predicated region
        $region13: #{tpu_custom_call.1} parent=11 // pred_check
          %p166 = pneg %p83
        $region14: #{tpu_custom_call.1} parent=11 // pred_check_branch
          %168 = sbr.rel (%p166) target = $region16
        $region15: #{tpu_custom_call.1} parent=11 // pred_region
          %s169 = smul.u32 32, %s27
          %s171 = ssub.s32 2048, 2048
          %172 = vsyncadd [#allocation7], %s171
          %s173 = smul.addr %s169, 64
          %s174 = scalar_lea.hbm %s1, %s173
          %s175 = sshll.u32 [#allocation6], 4
          %s176 = int_to_ptr.vmem [resolvable:$true] %s175
          %181 = dma.hbm_to_vmem [thread:$0]  %s174, 2048, %s176, [#allocation7], 64, 64, 4
        $region16: #{tpu_custom_call.1} parent=11 // pred_fallthru
          _
        // Predicated region
        $region17: #{tpu_custom_call.1} parent=11 // pred_check
          %p182 = pneg %p104
        $region18: #{tpu_custom_call.1} parent=11 // pred_check_branch
          %184 = sbr.rel (%p182) target = $region20
        $region19: #{tpu_custom_call.1} parent=11 // pred_region
          _
        $region20: #{tpu_custom_call.1} parent=11 // pred_fallthru
          _
        // Predicated region
        $region21: #{tpu_custom_call.1} parent=11 // pred_check
          %p185 = pneg %p125
        $region22: #{tpu_custom_call.1} parent=11 // pred_check_branch
          %187 = sbr.rel (%p185) target = $region24
        $region23: #{tpu_custom_call.1} parent=11 // pred_region
          _
        $region24: #{tpu_custom_call.1} parent=11 // pred_fallthru
          _
      $region12: #{tpu_custom_call.1} parent=5 // pred_fallthru
        _
      %p188 = scmp.lt.s32.totalorder %s17, 3
      // Predicated region
      $region25: #{tpu_custom_call.1} parent=5 // pred_check
        %p189 = pneg %p188
      $region26: #{tpu_custom_call.1} parent=5 // pred_check_branch
        %191 = sbr.rel (%p189) target = $region28
      $region27: #{tpu_custom_call.1} parent=5 // pred_region
        // Predicated region
        $region29: #{tpu_custom_call.1} parent=27 // pred_check
          %p192 = pneg %p51
        $region30: #{tpu_custom_call.1} parent=27 // pred_check_branch
          %194 = sbr.rel (%p192) target = $region32
        $region31: #{tpu_custom_call.1} parent=27 // pred_region
          %s195 = sand.u32 %s41, 1
          %s196 = scalar_lea.sflag [#allocation4], %s195
          %s197 = sand.u32 %s41, 1
          %s198 = smul.addr %s197, 448
          %s199 = scalar_lea.vmem [#allocation3], %s198
          %s200 = smul.u32 56, %s24
          %s201 = smul.u32 2, %s25
          %s203 = ssub.s32 7168, 7168
          %204 = vsyncadd %s196, %s203
          %s205 = smul.addr %s200, 2
          %s206 = sadd.s32 %s201, %s205
          %s207 = smul.addr %s206, 64
          %s208 = scalar_lea.hbm %s0, %s207
          %s209 = sshll.u32 %s199, 4
          %s210 = int_to_ptr.vmem [resolvable:$true] %s209
          %215 = dma.hbm_to_vmem [thread:$0]  %s208, 7168, %s210, %s196, 128, 128, 8
        $region32: #{tpu_custom_call.1} parent=27 // pred_fallthru
          _
      $region28: #{tpu_custom_call.1} parent=5 // pred_fallthru
        _
      %p216 = scmp.le.s32.totalorder 1, %s17
      %p217 = scmp.lt.s32.totalorder %s17, 4
      %p218 = pnand %p216, %p217
      %p219 = pneg %p218
      // Predicated region
      $region33: #{tpu_custom_call.1} parent=5 // pred_check
        _
      $region34: #{tpu_custom_call.1} parent=5 // pred_check_branch
        %221 = sbr.rel (%p218) target = $region36
      $region35: #{tpu_custom_call.1} parent=5 // pred_region
        %s222 = ssub.s32 %s17, 1
        %s223 = sand.u32 %s44, 1
        %s224 = scalar_lea.sflag [#allocation4], %s223
        %s225 = sand.u32 %s44, 1
        %s226 = smul.addr %s225, 448
        %s227 = scalar_lea.vmem [#allocation3], %s226
        // Predicated region
        $region37: #{tpu_custom_call.1} parent=35 // pred_check
          %p228 = pneg %p57
        $region38: #{tpu_custom_call.1} parent=35 // pred_check_branch
          %230 = sbr.rel (%p228) target = $region40
        $region39: #{tpu_custom_call.1} parent=35 // pred_region
          %231 = dma.done %s224, 7168
        $region40: #{tpu_custom_call.1} parent=35 // pred_fallthru
          _
        // Predicated region
        $region41: #{tpu_custom_call.1} parent=35 // pred_check
          %p232 = pneg %p83
        $region42: #{tpu_custom_call.1} parent=35 // pred_check_branch
          %234 = sbr.rel (%p232) target = $region44
        $region43: #{tpu_custom_call.1} parent=35 // pred_region
          %235 = dma.done [#allocation7], 2048
        $region44: #{tpu_custom_call.1} parent=35 // pred_fallthru
          _
        %s236 = sand.u32 %s44, 1
        %s237 = scalar_lea.sflag [#allocation4], %s236
        %s238 = sand.u32 %s44, 1
        %s239 = smul.addr %s238, 448
        %s240 = scalar_lea.vmem [#allocation3], %s239
        %p241 = pneg %p57
        %p242 = pneg %p54
        %p243 = pneg %p83
        %p244 = pneg %p80
        %p245 = pneg %p104
        %p246 = pneg %p101
        %p247 = pneg %p125
        %p248 = pneg %p122
        %p249 = pneg %p151
        %p250 = pneg %p148
        %s251 = sand.u32 %s138, 1
        %s252 = scalar_lea.sflag [#allocation5], %s251
        %s253 = sand.u32 %s138, 1
        %s254 = smul.addr %s253, 224
        %s255 = scalar_lea.vmem [#allocation8], %s254
        %s256 = smul.u32 56, %s26
        %s257 = smul.u32 2, %s27
        %s258 = smul.u32 32, %s27
        %s259 = smul.u32 56, %s26
        %p261 = scmp.eq.s32.totalorder %s27, 0
        // Predicated region
        $region45: #{tpu_custom_call.1} parent=35 // pred_check
          %p262 = pneg %p261
        $region46: #{tpu_custom_call.1} parent=35 // pred_check_branch
          %264 = sbr.rel (%p262) target = $region48
        $region47: #{tpu_custom_call.1} parent=35 // pred_region
          %265 = vst [vmem:[#allocation2] sm:$0xff] 0.0
          %266 = vst [vmem:[#allocation2 + $0x8] sm:$0xff] 0.0
          %267 = vst [vmem:[#allocation2 + $0x10] sm:$0xff] 0.0
          %268 = vst [vmem:[#allocation2 + $0x18] sm:$0xff] 0.0
          %269 = vst [vmem:[#allocation2 + $0x20] sm:$0xff] 0.0
          %270 = vst [vmem:[#allocation2 + $0x28] sm:$0xff] 0.0
          %271 = vst [vmem:[#allocation2 + $0x30] sm:$0xff] 0.0
          %272 = vst [vmem:[#allocation2 + $0x38] sm:$0xff] 0.0
          %273 = vst [vmem:[#allocation2 + $0x40] sm:$0xff] 0.0
          %274 = vst [vmem:[#allocation2 + $0x48] sm:$0xff] 0.0
          %275 = vst [vmem:[#allocation2 + $0x50] sm:$0xff] 0.0
          %276 = vst [vmem:[#allocation2 + $0x58] sm:$0xff] 0.0
          %277 = vst [vmem:[#allocation2 + $0x60] sm:$0xff] 0.0
          %278 = vst [vmem:[#allocation2 + $0x68] sm:$0xff] 0.0
          %279 = vst [vmem:[#allocation2 + $0x70] sm:$0xff] 0.0
          %280 = vst [vmem:[#allocation2 + $0x78] sm:$0xff] 0.0
          %281 = vst [vmem:[#allocation2 + $0x80] sm:$0xff] 0.0
          %282 = vst [vmem:[#allocation2 + $0x88] sm:$0xff] 0.0
          %283 = vst [vmem:[#allocation2 + $0x90] sm:$0xff] 0.0
          %284 = vst [vmem:[#allocation2 + $0x98] sm:$0xff] 0.0
          %285 = vst [vmem:[#allocation2 + $0xa0] sm:$0xff] 0.0
          %286 = vst [vmem:[#allocation2 + $0xa8] sm:$0xff] 0.0
          %287 = vst [vmem:[#allocation2 + $0xb0] sm:$0xff] 0.0
          %288 = vst [vmem:[#allocation2 + $0xb8] sm:$0xff] 0.0
          %289 = vst [vmem:[#allocation2 + $0xc0] sm:$0xff] 0.0
          %290 = vst [vmem:[#allocation2 + $0xc8] sm:$0xff] 0.0
          %291 = vst [vmem:[#allocation2 + $0xd0] sm:$0xff] 0.0
          %292 = vst [vmem:[#allocation2 + $0xd8] sm:$0xff] 0.0
          %293 = vst [vmem:[#allocation2 + $0xe0] sm:$0xff] 0.0
          %294 = vst [vmem:[#allocation2 + $0xe8] sm:$0xff] 0.0
          %295 = vst [vmem:[#allocation2 + $0xf0] sm:$0xff] 0.0
          %296 = vst [vmem:[#allocation2 + $0xf8] sm:$0xff] 0.0
          %297 = vst [vmem:[#allocation2 + $0x100] sm:$0xff] 0.0
          %298 = vst [vmem:[#allocation2 + $0x108] sm:$0xff] 0.0
          %299 = vst [vmem:[#allocation2 + $0x110] sm:$0xff] 0.0
          %300 = vst [vmem:[#allocation2 + $0x118] sm:$0xff] 0.0
          %301 = vst [vmem:[#allocation2 + $0x120] sm:$0xff] 0.0
          %302 = vst [vmem:[#allocation2 + $0x128] sm:$0xff] 0.0
          %303 = vst [vmem:[#allocation2 + $0x130] sm:$0xff] 0.0
          %304 = vst [vmem:[#allocation2 + $0x138] sm:$0xff] 0.0
          %305 = vst [vmem:[#allocation2 + $0x140] sm:$0xff] 0.0
          %306 = vst [vmem:[#allocation2 + $0x148] sm:$0xff] 0.0
          %307 = vst [vmem:[#allocation2 + $0x150] sm:$0xff] 0.0
          %308 = vst [vmem:[#allocation2 + $0x158] sm:$0xff] 0.0
          %309 = vst [vmem:[#allocation2 + $0x160] sm:$0xff] 0.0
          %310 = vst [vmem:[#allocation2 + $0x168] sm:$0xff] 0.0
          %311 = vst [vmem:[#allocation2 + $0x170] sm:$0xff] 0.0
          %312 = vst [vmem:[#allocation2 + $0x178] sm:$0xff] 0.0
          %313 = vst [vmem:[#allocation2 + $0x180] sm:$0xff] 0.0
          %314 = vst [vmem:[#allocation2 + $0x188] sm:$0xff] 0.0
          %315 = vst [vmem:[#allocation2 + $0x190] sm:$0xff] 0.0
          %316 = vst [vmem:[#allocation2 + $0x198] sm:$0xff] 0.0
          %317 = vst [vmem:[#allocation2 + $0x1a0] sm:$0xff] 0.0
          %318 = vst [vmem:[#allocation2 + $0x1a8] sm:$0xff] 0.0
          %319 = vst [vmem:[#allocation2 + $0x1b0] sm:$0xff] 0.0
          %320 = vst [vmem:[#allocation2 + $0x1b8] sm:$0xff] 0.0
        $region48: #{tpu_custom_call.1} parent=35 // pred_fallthru
          _
        %v321 = vld [vmem:[#allocation2] sm:$0xff]
        %v322 = vld [vmem:[#allocation2 + $0x8] sm:$0xff]
        %v323 = vld [vmem:[#allocation2 + $0x10] sm:$0xff]
        %v324 = vld [vmem:[#allocation2 + $0x18] sm:$0xff]
        %v325 = vld [vmem:[#allocation2 + $0x20] sm:$0xff]
        %v326 = vld [vmem:[#allocation2 + $0x28] sm:$0xff]
        %v327 = vld [vmem:[#allocation2 + $0x30] sm:$0xff]
        %v328 = vld [vmem:[#allocation2 + $0x38] sm:$0xff]
        %v329 = vld [vmem:[#allocation2 + $0x40] sm:$0xff]
        %v330 = vld [vmem:[#allocation2 + $0x48] sm:$0xff]
        %v331 = vld [vmem:[#allocation2 + $0x50] sm:$0xff]
        %v332 = vld [vmem:[#allocation2 + $0x58] sm:$0xff]
        %v333 = vld [vmem:[#allocation2 + $0x60] sm:$0xff]
        %v334 = vld [vmem:[#allocation2 + $0x68] sm:$0xff]
        %v335 = vld [vmem:[#allocation2 + $0x70] sm:$0xff]
        %v336 = vld [vmem:[#allocation2 + $0x78] sm:$0xff]
        %v337 = vld [vmem:[#allocation2 + $0x80] sm:$0xff]
        %v338 = vld [vmem:[#allocation2 + $0x88] sm:$0xff]
        %v339 = vld [vmem:[#allocation2 + $0x90] sm:$0xff]
        %v340 = vld [vmem:[#allocation2 + $0x98] sm:$0xff]
        %v341 = vld [vmem:[#allocation2 + $0xa0] sm:$0xff]
        %v342 = vld [vmem:[#allocation2 + $0xa8] sm:$0xff]
        %v343 = vld [vmem:[#allocation2 + $0xb0] sm:$0xff]
        %v344 = vld [vmem:[#allocation2 + $0xb8] sm:$0xff]
        %v345 = vld [vmem:[#allocation2 + $0xc0] sm:$0xff]
        %v346 = vld [vmem:[#allocation2 + $0xc8] sm:$0xff]
        %v347 = vld [vmem:[#allocation2 + $0xd0] sm:$0xff]
        %v348 = vld [vmem:[#allocation2 + $0xd8] sm:$0xff]
        %v349 = vld [vmem:[#allocation2 + $0xe0] sm:$0xff]
        %v350 = vld [vmem:[#allocation2 + $0xe8] sm:$0xff]
        %v351 = vld [vmem:[#allocation2 + $0xf0] sm:$0xff]
        %v352 = vld [vmem:[#allocation2 + $0xf8] sm:$0xff]
        %v353 = vld [vmem:[#allocation2 + $0x100] sm:$0xff]
        %v354 = vld [vmem:[#allocation2 + $0x108] sm:$0xff]
        %v355 = vld [vmem:[#allocation2 + $0x110] sm:$0xff]
        %v356 = vld [vmem:[#allocation2 + $0x118] sm:$0xff]
        %v357 = vld [vmem:[#allocation2 + $0x120] sm:$0xff]
        %v358 = vld [vmem:[#allocation2 + $0x128] sm:$0xff]
        %v359 = vld [vmem:[#allocation2 + $0x130] sm:$0xff]
        %v360 = vld [vmem:[#allocation2 + $0x138] sm:$0xff]
        %v361 = vld [vmem:[#allocation2 + $0x140] sm:$0xff]
        %v362 = vld [vmem:[#allocation2 + $0x148] sm:$0xff]
        %v363 = vld [vmem:[#allocation2 + $0x150] sm:$0xff]
        %v364 = vld [vmem:[#allocation2 + $0x158] sm:$0xff]
        %v365 = vld [vmem:[#allocation2 + $0x160] sm:$0xff]
        %v366 = vld [vmem:[#allocation2 + $0x168] sm:$0xff]
        %v367 = vld [vmem:[#allocation2 + $0x170] sm:$0xff]
        %v368 = vld [vmem:[#allocation2 + $0x178] sm:$0xff]
        %v369 = vld [vmem:[#allocation2 + $0x180] sm:$0xff]
        %v370 = vld [vmem:[#allocation2 + $0x188] sm:$0xff]
        %v371 = vld [vmem:[#allocation2 + $0x190] sm:$0xff]
        %v372 = vld [vmem:[#allocation2 + $0x198] sm:$0xff]
        %v373 = vld [vmem:[#allocation2 + $0x1a0] sm:$0xff]
        %v374 = vld [vmem:[#allocation2 + $0x1a8] sm:$0xff]
        %v375 = vld [vmem:[#allocation2 + $0x1b0] sm:$0xff]
        %v376 = vld [vmem:[#allocation2 + $0x1b8] sm:$0xff]
        %v377 = vld [vmem:[%s227] sm:$0xff]
        %v378 = vld [vmem:[%s227 + $0x8] sm:$0xff]
        %v379 = vld [vmem:[%s227 + $0x10] sm:$0xff]
        %v380 = vld [vmem:[%s227 + $0x18] sm:$0xff]
        %v381 = vld [vmem:[%s227 + $0x20] sm:$0xff]
        %v382 = vld [vmem:[%s227 + $0x28] sm:$0xff]
        %v383 = vld [vmem:[%s227 + $0x30] sm:$0xff]
        %v384 = vld [vmem:[%s227 + $0x38] sm:$0xff]
        %v385 = vld [vmem:[%s227 + $0x40] sm:$0xff]
        %v386 = vld [vmem:[%s227 + $0x48] sm:$0xff]
        %v387 = vld [vmem:[%s227 + $0x50] sm:$0xff]
        %v388 = vld [vmem:[%s227 + $0x58] sm:$0xff]
        %v389 = vld [vmem:[%s227 + $0x60] sm:$0xff]
        %v390 = vld [vmem:[%s227 + $0x68] sm:$0xff]
        %v391 = vld [vmem:[%s227 + $0x70] sm:$0xff]
        %v392 = vld [vmem:[%s227 + $0x78] sm:$0xff]
        %v393 = vld [vmem:[%s227 + $0x80] sm:$0xff]
        %v394 = vld [vmem:[%s227 + $0x88] sm:$0xff]
        %v395 = vld [vmem:[%s227 + $0x90] sm:$0xff]
        %v396 = vld [vmem:[%s227 + $0x98] sm:$0xff]
        %v397 = vld [vmem:[%s227 + $0xa0] sm:$0xff]
        %v398 = vld [vmem:[%s227 + $0xa8] sm:$0xff]
        %v399 = vld [vmem:[%s227 + $0xb0] sm:$0xff]
        %v400 = vld [vmem:[%s227 + $0xb8] sm:$0xff]
        %v401 = vld [vmem:[%s227 + $0xc0] sm:$0xff]
        %v402 = vld [vmem:[%s227 + $0xc8] sm:$0xff]
        %v403 = vld [vmem:[%s227 + $0xd0] sm:$0xff]
        %v404 = vld [vmem:[%s227 + $0xd8] sm:$0xff]
        %v405 = vld [vmem:[%s227 + $0xe0] sm:$0xff]
        %v406 = vld [vmem:[%s227 + $0xe8] sm:$0xff]
        %v407 = vld [vmem:[%s227 + $0xf0] sm:$0xff]
        %v408 = vld [vmem:[%s227 + $0xf8] sm:$0xff]
        %v409 = vld [vmem:[%s227 + $0x100] sm:$0xff]
        %v410 = vld [vmem:[%s227 + $0x108] sm:$0xff]
        %v411 = vld [vmem:[%s227 + $0x110] sm:$0xff]
        %v412 = vld [vmem:[%s227 + $0x118] sm:$0xff]
        %v413 = vld [vmem:[%s227 + $0x120] sm:$0xff]
        %v414 = vld [vmem:[%s227 + $0x128] sm:$0xff]
        %v415 = vld [vmem:[%s227 + $0x130] sm:$0xff]
        %v416 = vld [vmem:[%s227 + $0x138] sm:$0xff]
        %v417 = vld [vmem:[%s227 + $0x140] sm:$0xff]
        %v418 = vld [vmem:[%s227 + $0x148] sm:$0xff]
        %v419 = vld [vmem:[%s227 + $0x150] sm:$0xff]
        %v420 = vld [vmem:[%s227 + $0x158] sm:$0xff]
        %v421 = vld [vmem:[%s227 + $0x160] sm:$0xff]
        %v422 = vld [vmem:[%s227 + $0x168] sm:$0xff]
        %v423 = vld [vmem:[%s227 + $0x170] sm:$0xff]
        %v424 = vld [vmem:[%s227 + $0x178] sm:$0xff]
        %v425 = vld [vmem:[%s227 + $0x180] sm:$0xff]
        %v426 = vld [vmem:[%s227 + $0x188] sm:$0xff]
        %v427 = vld [vmem:[%s227 + $0x190] sm:$0xff]
        %v428 = vld [vmem:[%s227 + $0x198] sm:$0xff]
        %v429 = vld [vmem:[%s227 + $0x1a0] sm:$0xff]
        %v430 = vld [vmem:[%s227 + $0x1a8] sm:$0xff]
        %v431 = vld [vmem:[%s227 + $0x1b0] sm:$0xff]
        %v432 = vld [vmem:[%s227 + $0x1b8] sm:$0xff]
        %v433 = vld [vmem:[#allocation6] sm:$0xf]
        %v434 = vld [vmem:[#allocation6 + $0x4] sm:$0xf]
        %v435 = vld [vmem:[#allocation6 + $0x8] sm:$0xf]
        %v436 = vld [vmem:[#allocation6 + $0xc] sm:$0xf]
        %v437 = vld [vmem:[#allocation6 + $0x10] sm:$0xf]
        %v438 = vld [vmem:[#allocation6 + $0x14] sm:$0xf]
        %v439 = vld [vmem:[#allocation6 + $0x18] sm:$0xf]
        %v440 = vld [vmem:[#allocation6 + $0x1c] sm:$0xf]
        %v441 = vld [vmem:[#allocation6 + $0x20] sm:$0xf]
        %v442 = vld [vmem:[#allocation6 + $0x24] sm:$0xf]
        %v443 = vld [vmem:[#allocation6 + $0x28] sm:$0xf]
        %v444 = vld [vmem:[#allocation6 + $0x2c] sm:$0xf]
        %v445 = vld [vmem:[#allocation6 + $0x30] sm:$0xf]
        %v446 = vld [vmem:[#allocation6 + $0x34] sm:$0xf]
        %v447 = vld [vmem:[#allocation6 + $0x38] sm:$0xf]
        %v448 = vld [vmem:[#allocation6 + $0x3c] sm:$0xf]
        %v449 = vld [vmem:[#allocation6 + $0x40] sm:$0xf]
        %v450 = vld [vmem:[#allocation6 + $0x44] sm:$0xf]
        %v451 = vld [vmem:[#allocation6 + $0x48] sm:$0xf]
        %v452 = vld [vmem:[#allocation6 + $0x4c] sm:$0xf]
        %v453 = vld [vmem:[#allocation6 + $0x50] sm:$0xf]
        %v454 = vld [vmem:[#allocation6 + $0x54] sm:$0xf]
        %v455 = vld [vmem:[#allocation6 + $0x58] sm:$0xf]
        %v456 = vld [vmem:[#allocation6 + $0x5c] sm:$0xf]
        %v457 = vld [vmem:[#allocation6 + $0x60] sm:$0xf]
        %v458 = vld [vmem:[#allocation6 + $0x64] sm:$0xf]
        %v459 = vld [vmem:[#allocation6 + $0x68] sm:$0xf]
        %v460 = vld [vmem:[#allocation6 + $0x6c] sm:$0xf]
        %v461 = vld [vmem:[#allocation6 + $0x70] sm:$0xf]
        %v462 = vld [vmem:[#allocation6 + $0x74] sm:$0xf]
        %v463 = vld [vmem:[#allocation6 + $0x78] sm:$0xf]
        %v464 = vld [vmem:[#allocation6 + $0x7c] sm:$0xf]
        %v521 = vunpack.c.l.b16 %v377
        %v522 = vunpack.c.h.b16 %v377
        %v523 = vunpack.c.l.b16 %v378
        %v524 = vunpack.c.h.b16 %v378
        %v525 = vunpack.c.l.b16 %v379
        %v526 = vunpack.c.h.b16 %v379
        %v527 = vunpack.c.l.b16 %v380
        %v528 = vunpack.c.h.b16 %v380
        %v529 = vunpack.c.l.b16 %v381
        %v530 = vunpack.c.h.b16 %v381
        %v531 = vunpack.c.l.b16 %v382
        %v532 = vunpack.c.h.b16 %v382
        %v533 = vunpack.c.l.b16 %v383
        %v534 = vunpack.c.h.b16 %v383
        %v535 = vunpack.c.l.b16 %v384
        %v536 = vunpack.c.h.b16 %v384
        %v537 = vunpack.c.l.b16 %v385
        %v538 = vunpack.c.h.b16 %v385
        %v539 = vunpack.c.l.b16 %v386
        %v540 = vunpack.c.h.b16 %v386
        %v541 = vunpack.c.l.b16 %v387
        %v542 = vunpack.c.h.b16 %v387
        %v543 = vunpack.c.l.b16 %v388
        %v544 = vunpack.c.h.b16 %v388
        %v545 = vunpack.c.l.b16 %v389
        %v546 = vunpack.c.h.b16 %v389
        %v547 = vunpack.c.l.b16 %v390
        %v548 = vunpack.c.h.b16 %v390
        %v549 = vunpack.c.l.b16 %v391
        %v550 = vunpack.c.h.b16 %v391
        %v551 = vunpack.c.l.b16 %v392
        %v552 = vunpack.c.h.b16 %v392
        %v553 = vunpack.c.l.b16 %v393
        %v554 = vunpack.c.h.b16 %v393
        %v555 = vunpack.c.l.b16 %v394
        %v556 = vunpack.c.h.b16 %v394
        %v557 = vunpack.c.l.b16 %v395
        %v558 = vunpack.c.h.b16 %v395
        %v559 = vunpack.c.l.b16 %v396
        %v560 = vunpack.c.h.b16 %v396
        %v561 = vunpack.c.l.b16 %v397
        %v562 = vunpack.c.h.b16 %v397
        %v563 = vunpack.c.l.b16 %v398
        %v564 = vunpack.c.h.b16 %v398
        %v565 = vunpack.c.l.b16 %v399
        %v566 = vunpack.c.h.b16 %v399
        %v567 = vunpack.c.l.b16 %v400
        %v568 = vunpack.c.h.b16 %v400
        %v569 = vunpack.c.l.b16 %v401
        %v570 = vunpack.c.h.b16 %v401
        %v571 = vunpack.c.l.b16 %v402
        %v572 = vunpack.c.h.b16 %v402
        %v573 = vunpack.c.l.b16 %v403
        %v574 = vunpack.c.h.b16 %v403
        %v575 = vunpack.c.l.b16 %v404
        %v576 = vunpack.c.h.b16 %v404
        %v577 = vunpack.c.l.b16 %v405
        %v578 = vunpack.c.h.b16 %v405
        %v579 = vunpack.c.l.b16 %v406
        %v580 = vunpack.c.h.b16 %v406
        %v581 = vunpack.c.l.b16 %v407
        %v582 = vunpack.c.h.b16 %v407
        %v583 = vunpack.c.l.b16 %v408
        %v584 = vunpack.c.h.b16 %v408
        %v585 = vunpack.c.l.b16 %v409
        %v586 = vunpack.c.h.b16 %v409
        %v587 = vunpack.c.l.b16 %v410
        %v588 = vunpack.c.h.b16 %v410
        %v589 = vunpack.c.l.b16 %v411
        %v590 = vunpack.c.h.b16 %v411
        %v591 = vunpack.c.l.b16 %v412
        %v592 = vunpack.c.h.b16 %v412
        %v593 = vunpack.c.l.b16 %v413
        %v594 = vunpack.c.h.b16 %v413
        %v595 = vunpack.c.l.b16 %v414
        %v596 = vunpack.c.h.b16 %v414
        %v597 = vunpack.c.l.b16 %v415
        %v598 = vunpack.c.h.b16 %v415
        %v599 = vunpack.c.l.b16 %v416
        %v600 = vunpack.c.h.b16 %v416
        %v601 = vunpack.c.l.b16 %v417
        %v602 = vunpack.c.h.b16 %v417
        %v603 = vunpack.c.l.b16 %v418
        %v604 = vunpack.c.h.b16 %v418
        %v605 = vunpack.c.l.b16 %v419
        %v606 = vunpack.c.h.b16 %v419
        %v607 = vunpack.c.l.b16 %v420
        %v608 = vunpack.c.h.b16 %v420
        %v609 = vunpack.c.l.b16 %v421
        %v610 = vunpack.c.h.b16 %v421
        %v611 = vunpack.c.l.b16 %v422
        %v612 = vunpack.c.h.b16 %v422
        %v613 = vunpack.c.l.b16 %v423
        %v614 = vunpack.c.h.b16 %v423
        %v615 = vunpack.c.l.b16 %v424
        %v616 = vunpack.c.h.b16 %v424
        %v617 = vunpack.c.l.b16 %v425
        %v618 = vunpack.c.h.b16 %v425
        %v619 = vunpack.c.l.b16 %v426
        %v620 = vunpack.c.h.b16 %v426
        %v621 = vunpack.c.l.b16 %v427
        %v622 = vunpack.c.h.b16 %v427
        %v623 = vunpack.c.l.b16 %v428
        %v624 = vunpack.c.h.b16 %v428
        %v625 = vunpack.c.l.b16 %v429
        %v626 = vunpack.c.h.b16 %v429
        %v627 = vunpack.c.l.b16 %v430
        %v628 = vunpack.c.h.b16 %v430
        %v629 = vunpack.c.l.b16 %v431
        %v630 = vunpack.c.h.b16 %v431
        %v631 = vunpack.c.l.b16 %v432
        %v632 = vunpack.c.h.b16 %v432
        %v633 = vpack.c.b16 %v523, %v521
        %v634 = vpack.c.b16 %v524, %v522
        %v635 = vpack.c.b16 %v527, %v525
        %v636 = vpack.c.b16 %v528, %v526
        %v637 = vpack.c.b16 %v531, %v529
        %v638 = vpack.c.b16 %v532, %v530
        %v639 = vpack.c.b16 %v535, %v533
        %v640 = vpack.c.b16 %v536, %v534
        %v641 = vpack.c.b16 %v539, %v537
        %v642 = vpack.c.b16 %v540, %v538
        %v643 = vpack.c.b16 %v543, %v541
        %v644 = vpack.c.b16 %v544, %v542
        %v645 = vpack.c.b16 %v547, %v545
        %v646 = vpack.c.b16 %v548, %v546
        %v647 = vpack.c.b16 %v551, %v549
        %v648 = vpack.c.b16 %v552, %v550
        %v649 = vpack.c.b16 %v555, %v553
        %v650 = vpack.c.b16 %v556, %v554
        %v651 = vpack.c.b16 %v559, %v557
        %v652 = vpack.c.b16 %v560, %v558
        %v653 = vpack.c.b16 %v563, %v561
        %v654 = vpack.c.b16 %v564, %v562
        %v655 = vpack.c.b16 %v567, %v565
        %v656 = vpack.c.b16 %v568, %v566
        %v657 = vpack.c.b16 %v571, %v569
        %v658 = vpack.c.b16 %v572, %v570
        %v659 = vpack.c.b16 %v575, %v573
        %v660 = vpack.c.b16 %v576, %v574
        %v661 = vpack.c.b16 %v579, %v577
        %v662 = vpack.c.b16 %v580, %v578
        %v663 = vpack.c.b16 %v583, %v581
        %v664 = vpack.c.b16 %v584, %v582
        %v665 = vpack.c.b16 %v587, %v585
        %v666 = vpack.c.b16 %v588, %v586
        %v667 = vpack.c.b16 %v591, %v589
        %v668 = vpack.c.b16 %v592, %v590
        %v669 = vpack.c.b16 %v595, %v593
        %v670 = vpack.c.b16 %v596, %v594
        %v671 = vpack.c.b16 %v599, %v597
        %v672 = vpack.c.b16 %v600, %v598
        %v673 = vpack.c.b16 %v603, %v601
        %v674 = vpack.c.b16 %v604, %v602
        %v675 = vpack.c.b16 %v607, %v605
        %v676 = vpack.c.b16 %v608, %v606
        %v677 = vpack.c.b16 %v611, %v609
        %v678 = vpack.c.b16 %v612, %v610
        %v679 = vpack.c.b16 %v615, %v613
        %v680 = vpack.c.b16 %v616, %v614
        %v681 = vpack.c.b16 %v619, %v617
        %v682 = vpack.c.b16 %v620, %v618
        %v683 = vpack.c.b16 %v623, %v621
        %v684 = vpack.c.b16 %v624, %v622
        %v685 = vpack.c.b16 %v627, %v625
        %v686 = vpack.c.b16 %v628, %v626
        %v687 = vpack.c.b16 %v631, %v629
        %v688 = vpack.c.b16 %v632, %v630
        %v777 = vunpack.c.l.b16 %v433
        %v778 = vunpack.c.l.b16 %v434
        %v779 = vunpack.c.l.b16 %v435
        %v780 = vunpack.c.l.b16 %v436
        %v781 = vunpack.c.l.b16 %v437
        %v782 = vunpack.c.l.b16 %v438
        %v783 = vunpack.c.l.b16 %v439
        %v784 = vunpack.c.l.b16 %v440
        %v785 = vunpack.c.l.b16 %v441
        %v786 = vunpack.c.l.b16 %v442
        %v787 = vunpack.c.l.b16 %v443
        %v788 = vunpack.c.l.b16 %v444
        %v789 = vunpack.c.l.b16 %v445
        %v790 = vunpack.c.l.b16 %v446
        %v791 = vunpack.c.l.b16 %v447
        %v792 = vunpack.c.l.b16 %v448
        %v793 = vunpack.c.l.b16 %v449
        %v794 = vunpack.c.l.b16 %v450
        %v795 = vunpack.c.l.b16 %v451
        %v796 = vunpack.c.l.b16 %v452
        %v797 = vunpack.c.l.b16 %v453
        %v798 = vunpack.c.l.b16 %v454
        %v799 = vunpack.c.l.b16 %v455
        %v800 = vunpack.c.l.b16 %v456
        %v801 = vunpack.c.l.b16 %v457
        %v802 = vunpack.c.l.b16 %v458
        %v803 = vunpack.c.l.b16 %v459
        %v804 = vunpack.c.l.b16 %v460
        %v805 = vunpack.c.l.b16 %v461
        %v806 = vunpack.c.l.b16 %v462
        %v807 = vunpack.c.l.b16 %v463
        %v808 = vunpack.c.l.b16 %v464
        %v809 = vpack.c.b16 %v778, %v777
        %v810 = vpack.c.b16 %v780, %v779
        %v811 = vpack.c.b16 %v782, %v781
        %v812 = vpack.c.b16 %v784, %v783
        %v813 = vpack.c.b16 %v786, %v785
        %v814 = vpack.c.b16 %v788, %v787
        %v815 = vpack.c.b16 %v790, %v789
        %v816 = vpack.c.b16 %v792, %v791
        %v817 = vpack.c.b16 %v794, %v793
        %v818 = vpack.c.b16 %v796, %v795
        %v819 = vpack.c.b16 %v798, %v797
        %v820 = vpack.c.b16 %v800, %v799
        %v821 = vpack.c.b16 %v802, %v801
        %v822 = vpack.c.b16 %v804, %v803
        %v823 = vpack.c.b16 %v806, %v805
        %v824 = vpack.c.b16 %v808, %v807
        %841 = vmatprep.subr.bf16.mxu0 0
        %842 = vmatpush1.bf16.msra.mxu0 %v809
        %843 = vmatprep.subr.bf16.mxu0 0
        %844 = vmatpush1.bf16.msra.mxu0 %v810
        %845 = vmatprep.subr.bf16.mxu0 0
        %846 = vmatpush1.bf16.msra.mxu0 %v811
        %847 = vmatprep.subr.bf16.mxu0 0
        %848 = vmatpush1.bf16.msra.mxu0 %v812
        %849 = vmatprep.subr.bf16.mxu0 0
        %850 = vmatpush1.bf16.msra.mxu0 %v813
        %851 = vmatprep.subr.bf16.mxu0 0
        %852 = vmatpush1.bf16.msra.mxu0 %v814
        %853 = vmatprep.subr.bf16.mxu0 0
        %854 = vmatpush1.bf16.msra.mxu0 %v815
        %855 = vmatprep.subr.bf16.mxu0 0
        %856 = vmatpush1.bf16.msra.mxu0 %v816
        %857 = vmatprep.subr.bf16.mxu0 0
        %858 = vmatpush1.bf16.msra.mxu0 %v817
        %859 = vmatprep.subr.bf16.mxu0 0
        %860 = vmatpush1.bf16.msra.mxu0 %v818
        %861 = vmatprep.subr.bf16.mxu0 0
        %862 = vmatpush1.bf16.msra.mxu0 %v819
        %863 = vmatprep.subr.bf16.mxu0 0
        %864 = vmatpush1.bf16.msra.mxu0 %v820
        %865 = vmatprep.subr.bf16.mxu0 0
        %866 = vmatpush1.bf16.msra.mxu0 %v821
        %867 = vmatprep.subr.bf16.mxu0 0
        %868 = vmatpush1.bf16.msra.mxu0 %v822
        %869 = vmatprep.subr.bf16.mxu0 0
        %870 = vmatpush1.bf16.msra.mxu0 %v823
        %871 = vmatprep.subr.bf16.mxu0 0
        %872 = vmatpush1.bf16.msra.mxu0 %v824
        %873 = vmatprep.mubr.bf16.mxu0 %v634
        %874 = vmatmul.mubr.bf16.gmra.mrb[0].mxu0 %v633
        %v875 = vpop.f32.mrb[0].mxu0
        %v876 = vadd.f32 0.0, %v875
        %v877 = vpop.f32.mrb[0].mxu0
        %v878 = vpop.f32.mrb[0].mxu0
        %v879 = vadd.f32 0.0, %v878
        %v880 = vpop.f32.mrb[0].mxu0
        %881 = vmatprep.mubr.bf16.mxu0 %v636
        %882 = vmatmul.mubr.bf16.gmra.mrb[0].mxu0 %v635
        %v883 = vpop.f32.mrb[0].mxu0
        %v884 = vadd.f32 0.0, %v883
        %v885 = vpop.f32.mrb[0].mxu0
        %v886 = vpop.f32.mrb[0].mxu0
        %v887 = vadd.f32 0.0, %v886
        %v888 = vpop.f32.mrb[0].mxu0
        %889 = vmatprep.mubr.bf16.mxu0 %v638
        %890 = vmatmul.mubr.bf16.gmra.mrb[0].mxu0 %v637
        %v891 = vpop.f32.mrb[0].mxu0
        %v892 = vadd.f32 0.0, %v891
        %v893 = vpop.f32.mrb[0].mxu0
        %v894 = vpop.f32.mrb[0].mxu0
        %v895 = vadd.f32 0.0, %v894
        %v896 = vpop.f32.mrb[0].mxu0
        %897 = vmatprep.mubr.bf16.mxu0 %v640
        %898 = vmatmul.mubr.bf16.gmra.mrb[0].mxu0 %v639
        %v899 = vpop.f32.mrb[0].mxu0
        %v900 = vadd.f32 0.0, %v899
        %v901 = vpop.f32.mrb[0].mxu0
        %v902 = vpop.f32.mrb[0].mxu0
        %v903 = vadd.f32 0.0, %v902
        %v904 = vpop.f32.mrb[0].mxu0
        %905 = vmatprep.mubr.bf16.mxu0 %v642
        %906 = vmatmul.mubr.bf16.gmra.mrb[0].mxu0 %v641
        %v907 = vpop.f32.mrb[0].mxu0
        %v908 = vadd.f32 0.0, %v907
        %v909 = vpop.f32.mrb[0].mxu0
        %v910 = vpop.f32.mrb[0].mxu0
        %v911 = vadd.f32 0.0, %v910
        %v912 = vpop.f32.mrb[0].mxu0
        %913 = vmatprep.mubr.bf16.mxu0 %v644
        %914 = vmatmul.mubr.bf16.gmra.mrb[0].mxu0 %v643
        %v915 = vpop.f32.mrb[0].mxu0
        %v916 = vadd.f32 0.0, %v915
        %v917 = vpop.f32.mrb[0].mxu0
        %v918 = vpop.f32.mrb[0].mxu0
        %v919 = vadd.f32 0.0, %v918
        %v920 = vpop.f32.mrb[0].mxu0
        %921 = vmatprep.mubr.bf16.mxu0 %v646
        %922 = vmatmul.mubr.bf16.gmra.mrb[0].mxu0 %v645
        %v923 = vpop.f32.mrb[0].mxu0
        %v924 = vadd.f32 0.0, %v923
        %v925 = vpop.f32.mrb[0].mxu0
        %v926 = vpop.f32.mrb[0].mxu0
        %v927 = vadd.f32 0.0, %v926
        %v928 = vpop.f32.mrb[0].mxu0
        %929 = vmatprep.mubr.bf16.mxu0 %v648
        %930 = vmatmul.mubr.bf16.gmra.mrb[0].mxu0 %v647
        %v931 = vpop.f32.mrb[0].mxu0
        %v932 = vadd.f32 0.0, %v931
        %v933 = vpop.f32.mrb[0].mxu0
        %v934 = vpop.f32.mrb[0].mxu0
        %v935 = vadd.f32 0.0, %v934
        %v936 = vpop.f32.mrb[0].mxu0
        %937 = vmatprep.mubr.bf16.mxu0 %v650
        %938 = vmatmul.mubr.bf16.gmra.mrb[0].mxu0 %v649
        %v939 = vpop.f32.mrb[0].mxu0
        %v940 = vadd.f32 0.0, %v939
        %v941 = vpop.f32.mrb[0].mxu0
        %v942 = vpop.f32.mrb[0].mxu0
        %v943 = vadd.f32 0.0, %v942
        %v944 = vpop.f32.mrb[0].mxu0
        %945 = vmatprep.mubr.bf16.mxu0 %v652
        %946 = vmatmul.mubr.bf16.gmra.mrb[0].mxu0 %v651
        %v947 = vpop.f32.mrb[0].mxu0
        %v948 = vadd.f32 0.0, %v947
        %v949 = vpop.f32.mrb[0].mxu0
        %v950 = vpop.f32.mrb[0].mxu0
        %v951 = vadd.f32 0.0, %v950
        %v952 = vpop.f32.mrb[0].mxu0
        %953 = vmatprep.mubr.bf16.mxu0 %v654
        %954 = vmatmul.mubr.bf16.gmra.mrb[0].mxu0 %v653
        %v955 = vpop.f32.mrb[0].mxu0
        %v956 = vadd.f32 0.0, %v955
        %v957 = vpop.f32.mrb[0].mxu0
        %v958 = vpop.f32.mrb[0].mxu0
        %v959 = vadd.f32 0.0, %v958
        %v960 = vpop.f32.mrb[0].mxu0
        %961 = vmatprep.mubr.bf16.mxu0 %v656
        %962 = vmatmul.mubr.bf16.gmra.mrb[0].mxu0 %v655
        %v963 = vpop.f32.mrb[0].mxu0
        %v964 = vadd.f32 0.0, %v963
        %v965 = vpop.f32.mrb[0].mxu0
        %v966 = vpop.f32.mrb[0].mxu0
        %v967 = vadd.f32 0.0, %v966
        %v968 = vpop.f32.mrb[0].mxu0
        %969 = vmatprep.mubr.bf16.mxu0 %v658
        %970 = vmatmul.mubr.bf16.gmra.mrb[0].mxu0 %v657
        %v971 = vpop.f32.mrb[0].mxu0
        %v972 = vadd.f32 0.0, %v971
        %v973 = vpop.f32.mrb[0].mxu0
        %v974 = vpop.f32.mrb[0].mxu0
        %v975 = vadd.f32 0.0, %v974
        %v976 = vpop.f32.mrb[0].mxu0
        %977 = vmatprep.mubr.bf16.mxu0 %v660
        %978 = vmatmul.mubr.bf16.gmra.mrb[0].mxu0 %v659
        %v979 = vpop.f32.mrb[0].mxu0
        %v980 = vadd.f32 0.0, %v979
        %v981 = vpop.f32.mrb[0].mxu0
        %v982 = vpop.f32.mrb[0].mxu0
        %v983 = vadd.f32 0.0, %v982
        %v984 = vpop.f32.mrb[0].mxu0
        %985 = vmatprep.mubr.bf16.mxu0 %v662
        %986 = vmatmul.mubr.bf16.gmra.mrb[0].mxu0 %v661
        %v987 = vpop.f32.mrb[0].mxu0
        %v988 = vadd.f32 0.0, %v987
        %v989 = vpop.f32.mrb[0].mxu0
        %v990 = vpop.f32.mrb[0].mxu0
        %v991 = vadd.f32 0.0, %v990
        %v992 = vpop.f32.mrb[0].mxu0
        %993 = vmatprep.mubr.bf16.mxu0 %v664
        %994 = vmatmul.mubr.bf16.gmra.mrb[0].mxu0 %v663
        %v995 = vpop.f32.mrb[0].mxu0
        %v996 = vadd.f32 0.0, %v995
        %v997 = vpop.f32.mrb[0].mxu0
        %v998 = vpop.f32.mrb[0].mxu0
        %v999 = vadd.f32 0.0, %v998
        %v1000 = vpop.f32.mrb[0].mxu0
        %1001 = vmatprep.mubr.bf16.mxu0 %v666
        %1002 = vmatmul.mubr.bf16.gmra.mrb[0].mxu0 %v665
        %v1003 = vpop.f32.mrb[0].mxu0
        %v1004 = vadd.f32 0.0, %v1003
        %v1005 = vpop.f32.mrb[0].mxu0
        %v1006 = vpop.f32.mrb[0].mxu0
        %v1007 = vadd.f32 0.0, %v1006
        %v1008 = vpop.f32.mrb[0].mxu0
        %1009 = vmatprep.mubr.bf16.mxu0 %v668
        %1010 = vmatmul.mubr.bf16.gmra.mrb[0].mxu0 %v667
        %v1011 = vpop.f32.mrb[0].mxu0
        %v1012 = vadd.f32 0.0, %v1011
        %v1013 = vpop.f32.mrb[0].mxu0
        %v1014 = vpop.f32.mrb[0].mxu0
        %v1015 = vadd.f32 0.0, %v1014
        %v1016 = vpop.f32.mrb[0].mxu0
        %1017 = vmatprep.mubr.bf16.mxu0 %v670
        %1018 = vmatmul.mubr.bf16.gmra.mrb[0].mxu0 %v669
        %v1019 = vpop.f32.mrb[0].mxu0
        %v1020 = vadd.f32 0.0, %v1019
        %v1021 = vpop.f32.mrb[0].mxu0
        %v1022 = vpop.f32.mrb[0].mxu0
        %v1023 = vadd.f32 0.0, %v1022
        %v1024 = vpop.f32.mrb[0].mxu0
        %1025 = vmatprep.mubr.bf16.mxu0 %v672
        %1026 = vmatmul.mubr.bf16.gmra.mrb[0].mxu0 %v671
        %v1027 = vpop.f32.mrb[0].mxu0
        %v1028 = vadd.f32 0.0, %v1027
        %v1029 = vpop.f32.mrb[0].mxu0
        %v1030 = vpop.f32.mrb[0].mxu0
        %v1031 = vadd.f32 0.0, %v1030
        %v1032 = vpop.f32.mrb[0].mxu0
        %1033 = vmatprep.mubr.bf16.mxu0 %v674
        %1034 = vmatmul.mubr.bf16.gmra.mrb[0].mxu0 %v673
        %v1035 = vpop.f32.mrb[0].mxu0
        %v1036 = vadd.f32 0.0, %v1035
        %v1037 = vpop.f32.mrb[0].mxu0
        %v1038 = vpop.f32.mrb[0].mxu0
        %v1039 = vadd.f32 0.0, %v1038
        %v1040 = vpop.f32.mrb[0].mxu0
        %1041 = vmatprep.mubr.bf16.mxu0 %v676
        %1042 = vmatmul.mubr.bf16.gmra.mrb[0].mxu0 %v675
        %v1043 = vpop.f32.mrb[0].mxu0
        %v1044 = vadd.f32 0.0, %v1043
        %v1045 = vpop.f32.mrb[0].mxu0
        %v1046 = vpop.f32.mrb[0].mxu0
        %v1047 = vadd.f32 0.0, %v1046
        %v1048 = vpop.f32.mrb[0].mxu0
        %1049 = vmatprep.mubr.bf16.mxu0 %v678
        %1050 = vmatmul.mubr.bf16.gmra.mrb[0].mxu0 %v677
        %v1051 = vpop.f32.mrb[0].mxu0
        %v1052 = vadd.f32 0.0, %v1051
        %v1053 = vpop.f32.mrb[0].mxu0
        %v1054 = vpop.f32.mrb[0].mxu0
        %v1055 = vadd.f32 0.0, %v1054
        %v1056 = vpop.f32.mrb[0].mxu0
        %1057 = vmatprep.mubr.bf16.mxu0 %v680
        %1058 = vmatmul.mubr.bf16.gmra.mrb[0].mxu0 %v679
        %v1059 = vpop.f32.mrb[0].mxu0
        %v1060 = vadd.f32 0.0, %v1059
        %v1061 = vpop.f32.mrb[0].mxu0
        %v1062 = vpop.f32.mrb[0].mxu0
        %v1063 = vadd.f32 0.0, %v1062
        %v1064 = vpop.f32.mrb[0].mxu0
        %1065 = vmatprep.mubr.bf16.mxu0 %v682
        %1066 = vmatmul.mubr.bf16.gmra.mrb[0].mxu0 %v681
        %v1067 = vpop.f32.mrb[0].mxu0
        %v1068 = vadd.f32 0.0, %v1067
        %v1069 = vpop.f32.mrb[0].mxu0
        %v1070 = vpop.f32.mrb[0].mxu0
        %v1071 = vadd.f32 0.0, %v1070
        %v1072 = vpop.f32.mrb[0].mxu0
        %1073 = vmatprep.mubr.bf16.mxu0 %v684
        %1074 = vmatmul.mubr.bf16.gmra.mrb[0].mxu0 %v683
        %v1075 = vpop.f32.mrb[0].mxu0
        %v1076 = vadd.f32 0.0, %v1075
        %v1077 = vpop.f32.mrb[0].mxu0
        %v1078 = vpop.f32.mrb[0].mxu0
        %v1079 = vadd.f32 0.0, %v1078
        %v1080 = vpop.f32.mrb[0].mxu0
        %1081 = vmatprep.mubr.bf16.mxu0 %v686
        %1082 = vmatmul.mubr.bf16.gmra.mrb[0].mxu0 %v685
        %v1083 = vpop.f32.mrb[0].mxu0
        %v1084 = vadd.f32 0.0, %v1083
        %v1085 = vpop.f32.mrb[0].mxu0
        %v1086 = vpop.f32.mrb[0].mxu0
        %v1087 = vadd.f32 0.0, %v1086
        %v1088 = vpop.f32.mrb[0].mxu0
        %1089 = vmatprep.mubr.bf16.mxu0 %v688
        %1090 = vmatmul.mubr.bf16.gmra.mrb[0].mxu0 %v687
        %v1091 = vpop.f32.mrb[0].mxu0
        %v1092 = vadd.f32 0.0, %v1091
        %v1093 = vpop.f32.mrb[0].mxu0
        %v1094 = vpop.f32.mrb[0].mxu0
        %v1095 = vadd.f32 0.0, %v1094
        %v1096 = vpop.f32.mrb[0].mxu0
        %1097 = vdwg.mxu0
        %v1098 = vadd.f32 %v321, %v876
        %v1099 = vadd.f32 %v322, %v879
        %v1100 = vadd.f32 %v323, %v884
        %v1101 = vadd.f32 %v324, %v887
        %v1102 = vadd.f32 %v325, %v892
        %v1103 = vadd.f32 %v326, %v895
        %v1104 = vadd.f32 %v327, %v900
        %v1105 = vadd.f32 %v328, %v903
        %v1106 = vadd.f32 %v329, %v908
        %v1107 = vadd.f32 %v330, %v911
        %v1108 = vadd.f32 %v331, %v916
        %v1109 = vadd.f32 %v332, %v919
        %v1110 = vadd.f32 %v333, %v924
        %v1111 = vadd.f32 %v334, %v927
        %v1112 = vadd.f32 %v335, %v932
        %v1113 = vadd.f32 %v336, %v935
        %v1114 = vadd.f32 %v337, %v940
        %v1115 = vadd.f32 %v338, %v943
        %v1116 = vadd.f32 %v339, %v948
        %v1117 = vadd.f32 %v340, %v951
        %v1118 = vadd.f32 %v341, %v956
        %v1119 = vadd.f32 %v342, %v959
        %v1120 = vadd.f32 %v343, %v964
        %v1121 = vadd.f32 %v344, %v967
        %v1122 = vadd.f32 %v345, %v972
        %v1123 = vadd.f32 %v346, %v975
        %v1124 = vadd.f32 %v347, %v980
        %v1125 = vadd.f32 %v348, %v983
        %v1126 = vadd.f32 %v349, %v988
        %v1127 = vadd.f32 %v350, %v991
        %v1128 = vadd.f32 %v351, %v996
        %v1129 = vadd.f32 %v352, %v999
        %v1130 = vadd.f32 %v353, %v1004
        %v1131 = vadd.f32 %v354, %v1007
        %v1132 = vadd.f32 %v355, %v1012
        %v1133 = vadd.f32 %v356, %v1015
        %v1134 = vadd.f32 %v357, %v1020
        %v1135 = vadd.f32 %v358, %v1023
        %v1136 = vadd.f32 %v359, %v1028
        %v1137 = vadd.f32 %v360, %v1031
        %v1138 = vadd.f32 %v361, %v1036
        %v1139 = vadd.f32 %v362, %v1039
        %v1140 = vadd.f32 %v363, %v1044
        %v1141 = vadd.f32 %v364, %v1047
        %v1142 = vadd.f32 %v365, %v1052
        %v1143 = vadd.f32 %v366, %v1055
        %v1144 = vadd.f32 %v367, %v1060
        %v1145 = vadd.f32 %v368, %v1063
        %v1146 = vadd.f32 %v369, %v1068
        %v1147 = vadd.f32 %v370, %v1071
        %v1148 = vadd.f32 %v371, %v1076
        %v1149 = vadd.f32 %v372, %v1079
        %v1150 = vadd.f32 %v373, %v1084
        %v1151 = vadd.f32 %v374, %v1087
        %v1152 = vadd.f32 %v375, %v1092
        %v1153 = vadd.f32 %v376, %v1095
        %1154 = vst [vmem:[#allocation2] sm:$0xff] %v1098
        %1155 = vst [vmem:[#allocation2 + $0x8] sm:$0xff] %v1099
        %1156 = vst [vmem:[#allocation2 + $0x10] sm:$0xff] %v1100
        %1157 = vst [vmem:[#allocation2 + $0x18] sm:$0xff] %v1101
        %1158 = vst [vmem:[#allocation2 + $0x20] sm:$0xff] %v1102
        %1159 = vst [vmem:[#allocation2 + $0x28] sm:$0xff] %v1103
        %1160 = vst [vmem:[#allocation2 + $0x30] sm:$0xff] %v1104
        %1161 = vst [vmem:[#allocation2 + $0x38] sm:$0xff] %v1105
        %1162 = vst [vmem:[#allocation2 + $0x40] sm:$0xff] %v1106
        %1163 = vst [vmem:[#allocation2 + $0x48] sm:$0xff] %v1107
        %1164 = vst [vmem:[#allocation2 + $0x50] sm:$0xff] %v1108
        %1165 = vst [vmem:[#allocation2 + $0x58] sm:$0xff] %v1109
        %1166 = vst [vmem:[#allocation2 + $0x60] sm:$0xff] %v1110
        %1167 = vst [vmem:[#allocation2 + $0x68] sm:$0xff] %v1111
        %1168 = vst [vmem:[#allocation2 + $0x70] sm:$0xff] %v1112
        %1169 = vst [vmem:[#allocation2 + $0x78] sm:$0xff] %v1113
        %1170 = vst [vmem:[#allocation2 + $0x80] sm:$0xff] %v1114
        %1171 = vst [vmem:[#allocation2 + $0x88] sm:$0xff] %v1115
        %1172 = vst [vmem:[#allocation2 + $0x90] sm:$0xff] %v1116
        %1173 = vst [vmem:[#allocation2 + $0x98] sm:$0xff] %v1117
        %1174 = vst [vmem:[#allocation2 + $0xa0] sm:$0xff] %v1118
        %1175 = vst [vmem:[#allocation2 + $0xa8] sm:$0xff] %v1119
        %1176 = vst [vmem:[#allocation2 + $0xb0] sm:$0xff] %v1120
        %1177 = vst [vmem:[#allocation2 + $0xb8] sm:$0xff] %v1121
        %1178 = vst [vmem:[#allocation2 + $0xc0] sm:$0xff] %v1122
        %1179 = vst [vmem:[#allocation2 + $0xc8] sm:$0xff] %v1123
        %1180 = vst [vmem:[#allocation2 + $0xd0] sm:$0xff] %v1124
        %1181 = vst [vmem:[#allocation2 + $0xd8] sm:$0xff] %v1125
        %1182 = vst [vmem:[#allocation2 + $0xe0] sm:$0xff] %v1126
        %1183 = vst [vmem:[#allocation2 + $0xe8] sm:$0xff] %v1127
        %1184 = vst [vmem:[#allocation2 + $0xf0] sm:$0xff] %v1128
        %1185 = vst [vmem:[#allocation2 + $0xf8] sm:$0xff] %v1129
        %1186 = vst [vmem:[#allocation2 + $0x100] sm:$0xff] %v1130
        %1187 = vst [vmem:[#allocation2 + $0x108] sm:$0xff] %v1131
        %1188 = vst [vmem:[#allocation2 + $0x110] sm:$0xff] %v1132
        %1189 = vst [vmem:[#allocation2 + $0x118] sm:$0xff] %v1133
        %1190 = vst [vmem:[#allocation2 + $0x120] sm:$0xff] %v1134
        %1191 = vst [vmem:[#allocation2 + $0x128] sm:$0xff] %v1135
        %1192 = vst [vmem:[#allocation2 + $0x130] sm:$0xff] %v1136
        %1193 = vst [vmem:[#allocation2 + $0x138] sm:$0xff] %v1137
        %1194 = vst [vmem:[#allocation2 + $0x140] sm:$0xff] %v1138
        %1195 = vst [vmem:[#allocation2 + $0x148] sm:$0xff] %v1139
        %1196 = vst [vmem:[#allocation2 + $0x150] sm:$0xff] %v1140
        %1197 = vst [vmem:[#allocation2 + $0x158] sm:$0xff] %v1141
        %1198 = vst [vmem:[#allocation2 + $0x160] sm:$0xff] %v1142
        %1199 = vst [vmem:[#allocation2 + $0x168] sm:$0xff] %v1143
        %1200 = vst [vmem:[#allocation2 + $0x170] sm:$0xff] %v1144
        %1201 = vst [vmem:[#allocation2 + $0x178] sm:$0xff] %v1145
        %1202 = vst [vmem:[#allocation2 + $0x180] sm:$0xff] %v1146
        %1203 = vst [vmem:[#allocation2 + $0x188] sm:$0xff] %v1147
        %1204 = vst [vmem:[#allocation2 + $0x190] sm:$0xff] %v1148
        %1205 = vst [vmem:[#allocation2 + $0x198] sm:$0xff] %v1149
        %1206 = vst [vmem:[#allocation2 + $0x1a0] sm:$0xff] %v1150
        %1207 = vst [vmem:[#allocation2 + $0x1a8] sm:$0xff] %v1151
        %1208 = vst [vmem:[#allocation2 + $0x1b0] sm:$0xff] %v1152
        %1209 = vst [vmem:[#allocation2 + $0x1b8] sm:$0xff] %v1153
        // Predicated region
        $region49: #{tpu_custom_call.1} parent=35 // pred_check
          %p1210 = pneg %p261
        $region50: #{tpu_custom_call.1} parent=35 // pred_check_branch
          %1212 = sbr.rel (%p1210) target = $region52
        $region51: #{tpu_custom_call.1} parent=35 // pred_region
          %v1213 = vld [vmem:[#allocation2] sm:$0xff]
          %v1214 = vld [vmem:[#allocation2 + $0x8] sm:$0xff]
          %v1215 = vld [vmem:[#allocation2 + $0x10] sm:$0xff]
          %v1216 = vld [vmem:[#allocation2 + $0x18] sm:$0xff]
          %v1217 = vld [vmem:[#allocation2 + $0x20] sm:$0xff]
          %v1218 = vld [vmem:[#allocation2 + $0x28] sm:$0xff]
          %v1219 = vld [vmem:[#allocation2 + $0x30] sm:$0xff]
          %v1220 = vld [vmem:[#allocation2 + $0x38] sm:$0xff]
          %v1221 = vld [vmem:[#allocation2 + $0x40] sm:$0xff]
          %v1222 = vld [vmem:[#allocation2 + $0x48] sm:$0xff]
          %v1223 = vld [vmem:[#allocation2 + $0x50] sm:$0xff]
          %v1224 = vld [vmem:[#allocation2 + $0x58] sm:$0xff]
          %v1225 = vld [vmem:[#allocation2 + $0x60] sm:$0xff]
          %v1226 = vld [vmem:[#allocation2 + $0x68] sm:$0xff]
          %v1227 = vld [vmem:[#allocation2 + $0x70] sm:$0xff]
          %v1228 = vld [vmem:[#allocation2 + $0x78] sm:$0xff]
          %v1229 = vld [vmem:[#allocation2 + $0x80] sm:$0xff]
          %v1230 = vld [vmem:[#allocation2 + $0x88] sm:$0xff]
          %v1231 = vld [vmem:[#allocation2 + $0x90] sm:$0xff]
          %v1232 = vld [vmem:[#allocation2 + $0x98] sm:$0xff]
          %v1233 = vld [vmem:[#allocation2 + $0xa0] sm:$0xff]
          %v1234 = vld [vmem:[#allocation2 + $0xa8] sm:$0xff]
          %v1235 = vld [vmem:[#allocation2 + $0xb0] sm:$0xff]
          %v1236 = vld [vmem:[#allocation2 + $0xb8] sm:$0xff]
          %v1237 = vld [vmem:[#allocation2 + $0xc0] sm:$0xff]
          %v1238 = vld [vmem:[#allocation2 + $0xc8] sm:$0xff]
          %v1239 = vld [vmem:[#allocation2 + $0xd0] sm:$0xff]
          %v1240 = vld [vmem:[#allocation2 + $0xd8] sm:$0xff]
          %v1241 = vld [vmem:[#allocation2 + $0xe0] sm:$0xff]
          %v1242 = vld [vmem:[#allocation2 + $0xe8] sm:$0xff]
          %v1243 = vld [vmem:[#allocation2 + $0xf0] sm:$0xff]
          %v1244 = vld [vmem:[#allocation2 + $0xf8] sm:$0xff]
          %v1245 = vld [vmem:[#allocation2 + $0x100] sm:$0xff]
          %v1246 = vld [vmem:[#allocation2 + $0x108] sm:$0xff]
          %v1247 = vld [vmem:[#allocation2 + $0x110] sm:$0xff]
          %v1248 = vld [vmem:[#allocation2 + $0x118] sm:$0xff]
          %v1249 = vld [vmem:[#allocation2 + $0x120] sm:$0xff]
          %v1250 = vld [vmem:[#allocation2 + $0x128] sm:$0xff]
          %v1251 = vld [vmem:[#allocation2 + $0x130] sm:$0xff]
          %v1252 = vld [vmem:[#allocation2 + $0x138] sm:$0xff]
          %v1253 = vld [vmem:[#allocation2 + $0x140] sm:$0xff]
          %v1254 = vld [vmem:[#allocation2 + $0x148] sm:$0xff]
          %v1255 = vld [vmem:[#allocation2 + $0x150] sm:$0xff]
          %v1256 = vld [vmem:[#allocation2 + $0x158] sm:$0xff]
          %v1257 = vld [vmem:[#allocation2 + $0x160] sm:$0xff]
          %v1258 = vld [vmem:[#allocation2 + $0x168] sm:$0xff]
          %v1259 = vld [vmem:[#allocation2 + $0x170] sm:$0xff]
          %v1260 = vld [vmem:[#allocation2 + $0x178] sm:$0xff]
          %v1261 = vld [vmem:[#allocation2 + $0x180] sm:$0xff]
          %v1262 = vld [vmem:[#allocation2 + $0x188] sm:$0xff]
          %v1263 = vld [vmem:[#allocation2 + $0x190] sm:$0xff]
          %v1264 = vld [vmem:[#allocation2 + $0x198] sm:$0xff]
          %v1265 = vld [vmem:[#allocation2 + $0x1a0] sm:$0xff]
          %v1266 = vld [vmem:[#allocation2 + $0x1a8] sm:$0xff]
          %v1267 = vld [vmem:[#allocation2 + $0x1b0] sm:$0xff]
          %v1268 = vld [vmem:[#allocation2 + $0x1b8] sm:$0xff]
          %v1269 = vld [vmem:[%s2] sm:$0x1]
          %v1271 = vlaneseq
          %v1272 = vshrl.u32 %v1271, 7
          %v1273 = vsub.s32 0, %v1272
          %v1274 = vrot.slane %v1269, %v1273
          %v1276 = vmul.f32 %v1213, %v1274
          %v1277 = vmul.f32 %v1214, %v1274
          %v1278 = vmul.f32 %v1215, %v1274
          %v1279 = vmul.f32 %v1216, %v1274
          %v1280 = vmul.f32 %v1217, %v1274
          %v1281 = vmul.f32 %v1218, %v1274
          %v1282 = vmul.f32 %v1219, %v1274
          %v1283 = vmul.f32 %v1220, %v1274
          %v1284 = vmul.f32 %v1221, %v1274
          %v1285 = vmul.f32 %v1222, %v1274
          %v1286 = vmul.f32 %v1223, %v1274
          %v1287 = vmul.f32 %v1224, %v1274
          %v1288 = vmul.f32 %v1225, %v1274
          %v1289 = vmul.f32 %v1226, %v1274
          %v1290 = vmul.f32 %v1227, %v1274
          %v1291 = vmul.f32 %v1228, %v1274
          %v1292 = vmul.f32 %v1229, %v1274
          %v1293 = vmul.f32 %v1230, %v1274
          %v1294 = vmul.f32 %v1231, %v1274
          %v1295 = vmul.f32 %v1232, %v1274
          %v1296 = vmul.f32 %v1233, %v1274
          %v1297 = vmul.f32 %v1234, %v1274
          %v1298 = vmul.f32 %v1235, %v1274
          %v1299 = vmul.f32 %v1236, %v1274
          %v1300 = vmul.f32 %v1237, %v1274
          %v1301 = vmul.f32 %v1238, %v1274
          %v1302 = vmul.f32 %v1239, %v1274
          %v1303 = vmul.f32 %v1240, %v1274
          %v1304 = vmul.f32 %v1241, %v1274
          %v1305 = vmul.f32 %v1242, %v1274
          %v1306 = vmul.f32 %v1243, %v1274
          %v1307 = vmul.f32 %v1244, %v1274
          %v1308 = vmul.f32 %v1245, %v1274
          %v1309 = vmul.f32 %v1246, %v1274
          %v1310 = vmul.f32 %v1247, %v1274
          %v1311 = vmul.f32 %v1248, %v1274
          %v1312 = vmul.f32 %v1249, %v1274
          %v1313 = vmul.f32 %v1250, %v1274
          %v1314 = vmul.f32 %v1251, %v1274
          %v1315 = vmul.f32 %v1252, %v1274
          %v1316 = vmul.f32 %v1253, %v1274
          %v1317 = vmul.f32 %v1254, %v1274
          %v1318 = vmul.f32 %v1255, %v1274
          %v1319 = vmul.f32 %v1256, %v1274
          %v1320 = vmul.f32 %v1257, %v1274
          %v1321 = vmul.f32 %v1258, %v1274
          %v1322 = vmul.f32 %v1259, %v1274
          %v1323 = vmul.f32 %v1260, %v1274
          %v1324 = vmul.f32 %v1261, %v1274
          %v1325 = vmul.f32 %v1262, %v1274
          %v1326 = vmul.f32 %v1263, %v1274
          %v1327 = vmul.f32 %v1264, %v1274
          %v1328 = vmul.f32 %v1265, %v1274
          %v1329 = vmul.f32 %v1266, %v1274
          %v1330 = vmul.f32 %v1267, %v1274
          %v1331 = vmul.f32 %v1268, %v1274
          %v1332 = vld [vmem:[%s3] sm:$0x1]
          %v1334 = vlaneseq
          %v1335 = vshrl.u32 %v1334, 7
          %v1336 = vsub.s32 0, %v1335
          %v1337 = vrot.slane %v1332, %v1336
          %v1339 = vadd.f32 %v1276, %v1337
          %v1340 = vadd.f32 %v1277, %v1337
          %v1341 = vadd.f32 %v1278, %v1337
          %v1342 = vadd.f32 %v1279, %v1337
          %v1343 = vadd.f32 %v1280, %v1337
          %v1344 = vadd.f32 %v1281, %v1337
          %v1345 = vadd.f32 %v1282, %v1337
          %v1346 = vadd.f32 %v1283, %v1337
          %v1347 = vadd.f32 %v1284, %v1337
          %v1348 = vadd.f32 %v1285, %v1337
          %v1349 = vadd.f32 %v1286, %v1337
          %v1350 = vadd.f32 %v1287, %v1337
          %v1351 = vadd.f32 %v1288, %v1337
          %v1352 = vadd.f32 %v1289, %v1337
          %v1353 = vadd.f32 %v1290, %v1337
          %v1354 = vadd.f32 %v1291, %v1337
          %v1355 = vadd.f32 %v1292, %v1337
          %v1356 = vadd.f32 %v1293, %v1337
          %v1357 = vadd.f32 %v1294, %v1337
          %v1358 = vadd.f32 %v1295, %v1337
          %v1359 = vadd.f32 %v1296, %v1337
          %v1360 = vadd.f32 %v1297, %v1337
          %v1361 = vadd.f32 %v1298, %v1337
          %v1362 = vadd.f32 %v1299, %v1337
          %v1363 = vadd.f32 %v1300, %v1337
          %v1364 = vadd.f32 %v1301, %v1337
          %v1365 = vadd.f32 %v1302, %v1337
          %v1366 = vadd.f32 %v1303, %v1337
          %v1367 = vadd.f32 %v1304, %v1337
          %v1368 = vadd.f32 %v1305, %v1337
          %v1369 = vadd.f32 %v1306, %v1337
          %v1370 = vadd.f32 %v1307, %v1337
          %v1371 = vadd.f32 %v1308, %v1337
          %v1372 = vadd.f32 %v1309, %v1337
          %v1373 = vadd.f32 %v1310, %v1337
          %v1374 = vadd.f32 %v1311, %v1337
          %v1375 = vadd.f32 %v1312, %v1337
          %v1376 = vadd.f32 %v1313, %v1337
          %v1377 = vadd.f32 %v1314, %v1337
          %v1378 = vadd.f32 %v1315, %v1337
          %v1379 = vadd.f32 %v1316, %v1337
          %v1380 = vadd.f32 %v1317, %v1337
          %v1381 = vadd.f32 %v1318, %v1337
          %v1382 = vadd.f32 %v1319, %v1337
          %v1383 = vadd.f32 %v1320, %v1337
          %v1384 = vadd.f32 %v1321, %v1337
          %v1385 = vadd.f32 %v1322, %v1337
          %v1386 = vadd.f32 %v1323, %v1337
          %v1387 = vadd.f32 %v1324, %v1337
          %v1388 = vadd.f32 %v1325, %v1337
          %v1389 = vadd.f32 %v1326, %v1337
          %v1390 = vadd.f32 %v1327, %v1337
          %v1391 = vadd.f32 %v1328, %v1337
          %v1392 = vadd.f32 %v1329, %v1337
          %v1393 = vadd.f32 %v1330, %v1337
          %v1394 = vadd.f32 %v1331, %v1337
          %v1395 = vmax.f32 %v1339, 0.0
          %v1396 = vmax.f32 %v1340, 0.0
          %v1397 = vmax.f32 %v1341, 0.0
          %v1398 = vmax.f32 %v1342, 0.0
          %v1399 = vmax.f32 %v1343, 0.0
          %v1400 = vmax.f32 %v1344, 0.0
          %v1401 = vmax.f32 %v1345, 0.0
          %v1402 = vmax.f32 %v1346, 0.0
          %v1403 = vmax.f32 %v1347, 0.0
          %v1404 = vmax.f32 %v1348, 0.0
          %v1405 = vmax.f32 %v1349, 0.0
          %v1406 = vmax.f32 %v1350, 0.0
          %v1407 = vmax.f32 %v1351, 0.0
          %v1408 = vmax.f32 %v1352, 0.0
          %v1409 = vmax.f32 %v1353, 0.0
          %v1410 = vmax.f32 %v1354, 0.0
          %v1411 = vmax.f32 %v1355, 0.0
          %v1412 = vmax.f32 %v1356, 0.0
          %v1413 = vmax.f32 %v1357, 0.0
          %v1414 = vmax.f32 %v1358, 0.0
          %v1415 = vmax.f32 %v1359, 0.0
          %v1416 = vmax.f32 %v1360, 0.0
          %v1417 = vmax.f32 %v1361, 0.0
          %v1418 = vmax.f32 %v1362, 0.0
          %v1419 = vmax.f32 %v1363, 0.0
          %v1420 = vmax.f32 %v1364, 0.0
          %v1421 = vmax.f32 %v1365, 0.0
          %v1422 = vmax.f32 %v1366, 0.0
          %v1423 = vmax.f32 %v1367, 0.0
          %v1424 = vmax.f32 %v1368, 0.0
          %v1425 = vmax.f32 %v1369, 0.0
          %v1426 = vmax.f32 %v1370, 0.0
          %v1427 = vmax.f32 %v1371, 0.0
          %v1428 = vmax.f32 %v1372, 0.0
          %v1429 = vmax.f32 %v1373, 0.0
          %v1430 = vmax.f32 %v1374, 0.0
          %v1431 = vmax.f32 %v1375, 0.0
          %v1432 = vmax.f32 %v1376, 0.0
          %v1433 = vmax.f32 %v1377, 0.0
          %v1434 = vmax.f32 %v1378, 0.0
          %v1435 = vmax.f32 %v1379, 0.0
          %v1436 = vmax.f32 %v1380, 0.0
          %v1437 = vmax.f32 %v1381, 0.0
          %v1438 = vmax.f32 %v1382, 0.0
          %v1439 = vmax.f32 %v1383, 0.0
          %v1440 = vmax.f32 %v1384, 0.0
          %v1441 = vmax.f32 %v1385, 0.0
          %v1442 = vmax.f32 %v1386, 0.0
          %v1443 = vmax.f32 %v1387, 0.0
          %v1444 = vmax.f32 %v1388, 0.0
          %v1445 = vmax.f32 %v1389, 0.0
          %v1446 = vmax.f32 %v1390, 0.0
          %v1447 = vmax.f32 %v1391, 0.0
          %v1448 = vmax.f32 %v1392, 0.0
          %v1449 = vmax.f32 %v1393, 0.0
          %v1450 = vmax.f32 %v1394, 0.0
          %v1451 = vpack.c.bf16 %v1396, %v1395
          %v1452 = vpack.c.bf16 %v1398, %v1397
          %v1453 = vpack.c.bf16 %v1400, %v1399
          %v1454 = vpack.c.bf16 %v1402, %v1401
          %v1455 = vpack.c.bf16 %v1404, %v1403
          %v1456 = vpack.c.bf16 %v1406, %v1405
          %v1457 = vpack.c.bf16 %v1408, %v1407
          %v1458 = vpack.c.bf16 %v1410, %v1409
          %v1459 = vpack.c.bf16 %v1412, %v1411
          %v1460 = vpack.c.bf16 %v1414, %v1413
          %v1461 = vpack.c.bf16 %v1416, %v1415
          %v1462 = vpack.c.bf16 %v1418, %v1417
          %v1463 = vpack.c.bf16 %v1420, %v1419
          %v1464 = vpack.c.bf16 %v1422, %v1421
          %v1465 = vpack.c.bf16 %v1424, %v1423
          %v1466 = vpack.c.bf16 %v1426, %v1425
          %v1467 = vpack.c.bf16 %v1428, %v1427
          %v1468 = vpack.c.bf16 %v1430, %v1429
          %v1469 = vpack.c.bf16 %v1432, %v1431
          %v1470 = vpack.c.bf16 %v1434, %v1433
          %v1471 = vpack.c.bf16 %v1436, %v1435
          %v1472 = vpack.c.bf16 %v1438, %v1437
          %v1473 = vpack.c.bf16 %v1440, %v1439
          %v1474 = vpack.c.bf16 %v1442, %v1441
          %v1475 = vpack.c.bf16 %v1444, %v1443
          %v1476 = vpack.c.bf16 %v1446, %v1445
          %v1477 = vpack.c.bf16 %v1448, %v1447
          %v1478 = vpack.c.bf16 %v1450, %v1449
          %v1507 = vunpack.c.l.b16 %v1451
          %v1508 = vunpack.c.h.b16 %v1451
          %v1509 = vunpack.c.l.b16 %v1452
          %v1510 = vunpack.c.h.b16 %v1452
          %v1511 = vunpack.c.l.b16 %v1453
          %v1512 = vunpack.c.h.b16 %v1453
          %v1513 = vunpack.c.l.b16 %v1454
          %v1514 = vunpack.c.h.b16 %v1454
          %v1515 = vunpack.c.l.b16 %v1455
          %v1516 = vunpack.c.h.b16 %v1455
          %v1517 = vunpack.c.l.b16 %v1456
          %v1518 = vunpack.c.h.b16 %v1456
          %v1519 = vunpack.c.l.b16 %v1457
          %v1520 = vunpack.c.h.b16 %v1457
          %v1521 = vunpack.c.l.b16 %v1458
          %v1522 = vunpack.c.h.b16 %v1458
          %v1523 = vunpack.c.l.b16 %v1459
          %v1524 = vunpack.c.h.b16 %v1459
          %v1525 = vunpack.c.l.b16 %v1460
          %v1526 = vunpack.c.h.b16 %v1460
          %v1527 = vunpack.c.l.b16 %v1461
          %v1528 = vunpack.c.h.b16 %v1461
          %v1529 = vunpack.c.l.b16 %v1462
          %v1530 = vunpack.c.h.b16 %v1462
          %v1531 = vunpack.c.l.b16 %v1463
          %v1532 = vunpack.c.h.b16 %v1463
          %v1533 = vunpack.c.l.b16 %v1464
          %v1534 = vunpack.c.h.b16 %v1464
          %v1535 = vunpack.c.l.b16 %v1465
          %v1536 = vunpack.c.h.b16 %v1465
          %v1537 = vunpack.c.l.b16 %v1466
          %v1538 = vunpack.c.h.b16 %v1466
          %v1539 = vunpack.c.l.b16 %v1467
          %v1540 = vunpack.c.h.b16 %v1467
          %v1541 = vunpack.c.l.b16 %v1468
          %v1542 = vunpack.c.h.b16 %v1468
          %v1543 = vunpack.c.l.b16 %v1469
          %v1544 = vunpack.c.h.b16 %v1469
          %v1545 = vunpack.c.l.b16 %v1470
          %v1546 = vunpack.c.h.b16 %v1470
          %v1547 = vunpack.c.l.b16 %v1471
          %v1548 = vunpack.c.h.b16 %v1471
          %v1549 = vunpack.c.l.b16 %v1472
          %v1550 = vunpack.c.h.b16 %v1472
          %v1551 = vunpack.c.l.b16 %v1473
          %v1552 = vunpack.c.h.b16 %v1473
          %v1553 = vunpack.c.l.b16 %v1474
          %v1554 = vunpack.c.h.b16 %v1474
          %v1555 = vunpack.c.l.b16 %v1475
          %v1556 = vunpack.c.h.b16 %v1475
          %v1557 = vunpack.c.l.b16 %v1476
          %v1558 = vunpack.c.h.b16 %v1476
          %v1559 = vunpack.c.l.b16 %v1477
          %v1560 = vunpack.c.h.b16 %v1477
          %v1561 = vunpack.c.l.b16 %v1478
          %v1562 = vunpack.c.h.b16 %v1478
          %v1563 = vpack.c.b16 %v1507, %v1507
          %v1564 = vpack.c.b16 %v1508, %v1508
          %v1565 = vpack.c.b16 %v1509, %v1509
          %v1566 = vpack.c.b16 %v1510, %v1510
          %v1567 = vpack.c.b16 %v1511, %v1511
          %v1568 = vpack.c.b16 %v1512, %v1512
          %v1569 = vpack.c.b16 %v1513, %v1513
          %v1570 = vpack.c.b16 %v1514, %v1514
          %v1571 = vpack.c.b16 %v1515, %v1515
          %v1572 = vpack.c.b16 %v1516, %v1516
          %v1573 = vpack.c.b16 %v1517, %v1517
          %v1574 = vpack.c.b16 %v1518, %v1518
          %v1575 = vpack.c.b16 %v1519, %v1519
          %v1576 = vpack.c.b16 %v1520, %v1520
          %v1577 = vpack.c.b16 %v1521, %v1521
          %v1578 = vpack.c.b16 %v1522, %v1522
          %v1579 = vpack.c.b16 %v1523, %v1523
          %v1580 = vpack.c.b16 %v1524, %v1524
          %v1581 = vpack.c.b16 %v1525, %v1525
          %v1582 = vpack.c.b16 %v1526, %v1526
          %v1583 = vpack.c.b16 %v1527, %v1527
          %v1584 = vpack.c.b16 %v1528, %v1528
          %v1585 = vpack.c.b16 %v1529, %v1529
          %v1586 = vpack.c.b16 %v1530, %v1530
          %v1587 = vpack.c.b16 %v1531, %v1531
          %v1588 = vpack.c.b16 %v1532, %v1532
          %v1589 = vpack.c.b16 %v1533, %v1533
          %v1590 = vpack.c.b16 %v1534, %v1534
          %v1591 = vpack.c.b16 %v1535, %v1535
          %v1592 = vpack.c.b16 %v1536, %v1536
          %v1593 = vpack.c.b16 %v1537, %v1537
          %v1594 = vpack.c.b16 %v1538, %v1538
          %v1595 = vpack.c.b16 %v1539, %v1539
          %v1596 = vpack.c.b16 %v1540, %v1540
          %v1597 = vpack.c.b16 %v1541, %v1541
          %v1598 = vpack.c.b16 %v1542, %v1542
          %v1599 = vpack.c.b16 %v1543, %v1543
          %v1600 = vpack.c.b16 %v1544, %v1544
          %v1601 = vpack.c.b16 %v1545, %v1545
          %v1602 = vpack.c.b16 %v1546, %v1546
          %v1603 = vpack.c.b16 %v1547, %v1547
          %v1604 = vpack.c.b16 %v1548, %v1548
          %v1605 = vpack.c.b16 %v1549, %v1549
          %v1606 = vpack.c.b16 %v1550, %v1550
          %v1607 = vpack.c.b16 %v1551, %v1551
          %v1608 = vpack.c.b16 %v1552, %v1552
          %v1609 = vpack.c.b16 %v1553, %v1553
          %v1610 = vpack.c.b16 %v1554, %v1554
          %v1611 = vpack.c.b16 %v1555, %v1555
          %v1612 = vpack.c.b16 %v1556, %v1556
          %v1613 = vpack.c.b16 %v1557, %v1557
          %v1614 = vpack.c.b16 %v1558, %v1558
          %v1615 = vpack.c.b16 %v1559, %v1559
          %v1616 = vpack.c.b16 %v1560, %v1560
          %v1617 = vpack.c.b16 %v1561, %v1561
          %v1618 = vpack.c.b16 %v1562, %v1562
          %1675 = vst [vmem:[%s255] sm:$0xf] %v1563
          %1676 = vst [vmem:[%s255 + $0x4] sm:$0xf] %v1564
          %1677 = vst [vmem:[%s255 + $0x8] sm:$0xf] %v1565
          %1678 = vst [vmem:[%s255 + $0xc] sm:$0xf] %v1566
          %1679 = vst [vmem:[%s255 + $0x10] sm:$0xf] %v1567
          %1680 = vst [vmem:[%s255 + $0x14] sm:$0xf] %v1568
          %1681 = vst [vmem:[%s255 + $0x18] sm:$0xf] %v1569
          %1682 = vst [vmem:[%s255 + $0x1c] sm:$0xf] %v1570
          %1683 = vst [vmem:[%s255 + $0x20] sm:$0xf] %v1571
          %1684 = vst [vmem:[%s255 + $0x24] sm:$0xf] %v1572
          %1685 = vst [vmem:[%s255 + $0x28] sm:$0xf] %v1573
          %1686 = vst [vmem:[%s255 + $0x2c] sm:$0xf] %v1574
          %1687 = vst [vmem:[%s255 + $0x30] sm:$0xf] %v1575
          %1688 = vst [vmem:[%s255 + $0x34] sm:$0xf] %v1576
          %1689 = vst [vmem:[%s255 + $0x38] sm:$0xf] %v1577
          %1690 = vst [vmem:[%s255 + $0x3c] sm:$0xf] %v1578
          %1691 = vst [vmem:[%s255 + $0x40] sm:$0xf] %v1579
          %1692 = vst [vmem:[%s255 + $0x44] sm:$0xf] %v1580
          %1693 = vst [vmem:[%s255 + $0x48] sm:$0xf] %v1581
          %1694 = vst [vmem:[%s255 + $0x4c] sm:$0xf] %v1582
          %1695 = vst [vmem:[%s255 + $0x50] sm:$0xf] %v1583
          %1696 = vst [vmem:[%s255 + $0x54] sm:$0xf] %v1584
          %1697 = vst [vmem:[%s255 + $0x58] sm:$0xf] %v1585
          %1698 = vst [vmem:[%s255 + $0x5c] sm:$0xf] %v1586
          %1699 = vst [vmem:[%s255 + $0x60] sm:$0xf] %v1587
          %1700 = vst [vmem:[%s255 + $0x64] sm:$0xf] %v1588
          %1701 = vst [vmem:[%s255 + $0x68] sm:$0xf] %v1589
          %1702 = vst [vmem:[%s255 + $0x6c] sm:$0xf] %v1590
          %1703 = vst [vmem:[%s255 + $0x70] sm:$0xf] %v1591
          %1704 = vst [vmem:[%s255 + $0x74] sm:$0xf] %v1592
          %1705 = vst [vmem:[%s255 + $0x78] sm:$0xf] %v1593
          %1706 = vst [vmem:[%s255 + $0x7c] sm:$0xf] %v1594
          %1707 = vst [vmem:[%s255 + $0x80] sm:$0xf] %v1595
          %1708 = vst [vmem:[%s255 + $0x84] sm:$0xf] %v1596
          %1709 = vst [vmem:[%s255 + $0x88] sm:$0xf] %v1597
          %1710 = vst [vmem:[%s255 + $0x8c] sm:$0xf] %v1598
          %1711 = vst [vmem:[%s255 + $0x90] sm:$0xf] %v1599
          %1712 = vst [vmem:[%s255 + $0x94] sm:$0xf] %v1600
          %1713 = vst [vmem:[%s255 + $0x98] sm:$0xf] %v1601
          %1714 = vst [vmem:[%s255 + $0x9c] sm:$0xf] %v1602
          %1715 = vst [vmem:[%s255 + $0xa0] sm:$0xf] %v1603
          %1716 = vst [vmem:[%s255 + $0xa4] sm:$0xf] %v1604
          %1717 = vst [vmem:[%s255 + $0xa8] sm:$0xf] %v1605
          %1718 = vst [vmem:[%s255 + $0xac] sm:$0xf] %v1606
          %1719 = vst [vmem:[%s255 + $0xb0] sm:$0xf] %v1607
          %1720 = vst [vmem:[%s255 + $0xb4] sm:$0xf] %v1608
          %1721 = vst [vmem:[%s255 + $0xb8] sm:$0xf] %v1609
          %1722 = vst [vmem:[%s255 + $0xbc] sm:$0xf] %v1610
          %1723 = vst [vmem:[%s255 + $0xc0] sm:$0xf] %v1611
          %1724 = vst [vmem:[%s255 + $0xc4] sm:$0xf] %v1612
          %1725 = vst [vmem:[%s255 + $0xc8] sm:$0xf] %v1613
          %1726 = vst [vmem:[%s255 + $0xcc] sm:$0xf] %v1614
          %1727 = vst [vmem:[%s255 + $0xd0] sm:$0xf] %v1615
          %1728 = vst [vmem:[%s255 + $0xd4] sm:$0xf] %v1616
          %1729 = vst [vmem:[%s255 + $0xd8] sm:$0xf] %v1617
          %1730 = vst [vmem:[%s255 + $0xdc] sm:$0xf] %v1618
        $region52: #{tpu_custom_call.1} parent=35 // pred_fallthru
          _
        %s1731 = sand.u32 %s138, 1
        %s1732 = scalar_lea.sflag [#allocation5], %s1731
        %s1733 = sand.u32 %s138, 1
        %s1734 = smul.addr %s1733, 224
        %s1735 = scalar_lea.vmem [#allocation8], %s1734
        // Predicated region
        $region53: #{tpu_custom_call.1} parent=35 // pred_check
          %p1736 = pneg %p148
        $region54: #{tpu_custom_call.1} parent=35 // pred_check_branch
          %1738 = sbr.rel (%p1736) target = $region56
        $region55: #{tpu_custom_call.1} parent=35 // pred_region
          %s1739 = smul.u32 56, %s26
          %s1741 = ssub.s32 3584, 3584
          %1742 = vsyncadd %s1732, %s1741
          %s1743 = smul.addr %s1739, 64
          %s1744 = scalar_lea.hbm %s4, %s1743
          %s1745 = sshll.u32 %s1735, 4
          %s1746 = int_to_ptr.vmem [resolvable:$true] %s1745
          %1751 = dma.vmem_to_hbm [thread:$0]  %s1746, 3584, %s1744, %s1732, 64, 64, 4
        $region56: #{tpu_custom_call.1} parent=35 // pred_fallthru
          _
      $region36: #{tpu_custom_call.1} parent=5 // pred_fallthru
        _
      %p1752 = scmp.le.s32.totalorder 2, %s17
      // Predicated region
      $region57: #{tpu_custom_call.1} parent=5 // pred_check
        %p1753 = pneg %p1752
      $region58: #{tpu_custom_call.1} parent=5 // pred_check_branch
        %1755 = sbr.rel (%p1753) target = $region60
      $region59: #{tpu_custom_call.1} parent=5 // pred_region
        %s1756 = ssub.s32 %s17, 2
        // Predicated region
        $region61: #{tpu_custom_call.1} parent=59 // pred_check
          %p1757 = pneg %p154
        $region62: #{tpu_custom_call.1} parent=59 // pred_check_branch
          %1759 = sbr.rel (%p1757) target = $region64
        $region63: #{tpu_custom_call.1} parent=59 // pred_region
          %s1760 = sand.u32 %s139, 1
          %s1761 = scalar_lea.sflag [#allocation5], %s1760
          %s1762 = sand.u32 %s139, 1
          %s1763 = smul.addr %s1762, 224
          %s1764 = scalar_lea.vmem [#allocation8], %s1763
          %1765 = dma.done %s1761, 3584
        $region64: #{tpu_custom_call.1} parent=59 // pred_fallthru
          _
      $region60: #{tpu_custom_call.1} parent=5 // pred_fallthru
        _
    $region6: #{tpu_custom_call.1} parent=1 // loop_footer
      %s21 = sadd.s32 1, %s17
    $region7: #{tpu_custom_call.1} parent=1 // loop_footer_branch
      %16 = sbr.rel target = $region3
    $region8: #{tpu_custom_call.1} parent=1 // loop_exit
      _
    %1766 = vsyncpa [#allocation4], 1
    %s1767 = scalar_lea.sflag [#allocation4], 1
    %1768 = vsyncpa %s1767, 1
    %1769 = vsyncpa [#allocation7], 1
    %1770 = vsyncpa [#allocation5], 1
    %s1771 = scalar_lea.sflag [#allocation5], 1
    %1772 = vsyncpa %s1771, 1

</llo_original>
